<compile_context>
chip_gen: v6e
topology: v6e:2x2x1
jax: 0.10.0
libtpu: 0.0.40
codegen_flags: <defaults>
</compile_context>

<pallas_src>
import functools

import jax
import jax.numpy as jnp
from jax import lax
from jax.experimental import pallas as pl
from jax.experimental.pallas import tpu as pltpu

EPS = 1e-5
# Explicit scoped-VMEM limit: below v7x's 64 MiB physical, well below
# v5e/v6e's 128 MiB, above v5e's 16 MiB default scoped limit.
_VMEM_LIMIT = 48 * 1024 * 1024


# ---------------------------------------------------------------------------
# In-kernel helpers
# ---------------------------------------------------------------------------
def _pad1_hw(x):
    """Zero halo of 1 on the two leading (spatial) dims, built in VMEM."""
    ho, wo, c = x.shape
    zr = jnp.zeros((1, wo, c), x.dtype)
    zc = jnp.zeros((ho + 2, 1, c), x.dtype)
    xp = jnp.concatenate([zr, x, zr], axis=0)          # (ho+2, wo,   c)
    return jnp.concatenate([zc, xp, zc], axis=1)       # (ho+2, wo+2, c)


def _im2col_conv(xp, w, *, ho, wo, cin, cout):
    """Single-dot 3x3 conv: (hw, 9*cin) x (9*cin, cout) -> f32 (hw, cout).

    dw shifts are done once on the lane axis, dh shifts ride the free major
    axis; lane order is (kh, kw, cin) matching the weight reshape.
    """
    cols = jnp.concatenate([xp[:, dw:dw + wo, :] for dw in range(3)], axis=-1)
    lhs = jnp.concatenate([cols[dh:dh + ho] for dh in range(3)], axis=-1)
    lhs = lhs.reshape(ho * wo, 9 * cin)
    return jnp.dot(lhs, w, preferred_element_type=jnp.float32)


def _tile_stats(acc, hw):
    """Per-tile BatchNorm partials: (sum, centered M2) — merged in the wrapper."""
    tsum = jnp.sum(acc, axis=0, keepdims=True)
    d = acc - tsum * (1.0 / hw)
    return tsum, jnp.sum(d * d, axis=0, keepdims=True)


# ---------------------------------------------------------------------------
# Kernels
# ---------------------------------------------------------------------------
def _pool_conv1_kernel(x_ref, w_ref, y_ref, ssum_ref, m2_ref, *, ho, wo, cin, cmid):
    """Fused 2x2 max-pool + 3x3 conv (pad=1, no bias) + BN1 partial stats."""
    a = x_ref[...]                                     # (ho, 2, wo, 2*cin) bf16
    hm = jnp.maximum(a[:, 0], a[:, 1])                 # max over H phase
    pooled = jnp.maximum(hm[..., :cin], hm[..., cin:]) # max over W phase -> (ho, wo, cin)

    xp = _pad1_hw(pooled)                              # zero halo == conv padding
    acc = _im2col_conv(xp, w_ref[...], ho=ho, wo=wo, cin=cin, cout=cmid)

    tsum, m2 = _tile_stats(acc, ho * wo)
    ssum_ref[...] = tsum
    m2_ref[...] = m2
    y_ref[...] = acc.reshape(ho, wo, cmid).astype(y_ref.dtype)


def _bnrelu_conv2_kernel(y1_ref, scale_ref, shift_ref, w_ref,
                         y2_ref, ssum_ref, m2_ref, *, ho, wo, cmid, cout):
    """BN1-apply + ReLU fused into conv2's load, 3x3 conv + BN2 partial stats."""
    a1 = jnp.maximum(
        y1_ref[...].astype(jnp.float32) * scale_ref[...] + shift_ref[...], 0.0)

    xp = _pad1_hw(a1.astype(jnp.bfloat16))
    acc = _im2col_conv(xp, w_ref[...], ho=ho, wo=wo, cin=cmid, cout=cout)

    tsum, m2 = _tile_stats(acc, ho * wo)
    ssum_ref[...] = tsum
    m2_ref[...] = m2
    y2_ref[...] = acc.astype(y2_ref.dtype)


def _bnrelu_to_nchw_kernel(y2_ref, scale_ref, shift_ref, o_ref):
    """BN2-apply + ReLU + (hw, cout)->(cout, hw) transpose (writes NCHW directly)."""
    a = jnp.maximum(
        y2_ref[...].astype(jnp.float32) * scale_ref[...] + shift_ref[...], 0.0)
    o_ref[...] = jnp.transpose(a, (1, 0)).astype(o_ref.dtype)


# ---------------------------------------------------------------------------
# Wrapper
# ---------------------------------------------------------------------------
def _finalize_bn(ssum, m2, gamma, beta, tile_count, total_count):
    """Merge per-tile (sum, M2) with the parallel-variance formula; fold gamma/beta."""
    c = ssum.shape[-1]
    tile_mean = ssum / tile_count                       # (n, 1, c)
    mean = jnp.sum(ssum, axis=0) / total_count          # (1, c)
    dm = tile_mean - mean
    var = (jnp.sum(m2, axis=0) + tile_count * jnp.sum(dm * dm, axis=0)) / total_count
    scale = gamma.reshape(1, c).astype(jnp.float32) * lax.rsqrt(var + EPS)
    shift = beta.reshape(1, c).astype(jnp.float32) - mean * scale
    return scale, shift


def down_forward(x_nchw, params):
    """Down(in_ch, out_ch).forward(x) with attention=False, residual=False."""
    n, cin, h, w_sp = x_nchw.shape
    assert h % 2 == 0 and w_sp % 2 == 0, "MaxPool2d(2) requires even H, W"
    ho, wo = h // 2, w_sp // 2
    hw = ho * wo
    cmid = params["w1"].shape[0]
    cout = params["w2"].shape[0]

    # NCHW -> NHWC (channels on lanes), bf16 MXU feed; the contiguous reshape
    # exposes the 2x2 pool phases (no HBM pad copy -- halo is built in VMEM).
    x = jnp.transpose(x_nchw, (0, 2, 3, 1)).astype(jnp.bfloat16)
    xin = x.reshape(n, ho, 2, wo, 2 * cin)

    # PyTorch (Cout, Cin, 3, 3) -> (kh, kw, Cin, Cout) -> (9*Cin, Cout), bf16.
    w1 = jnp.transpose(params["w1"], (2, 3, 1, 0)).reshape(9 * cin, cmid).astype(jnp.bfloat16)
    w2 = jnp.transpose(params["w2"], (2, 3, 1, 0)).reshape(9 * cmid, cout).astype(jnp.bfloat16)

    cparams = pltpu.CompilerParams(dimension_semantics=("parallel",),
                                   vmem_limit_bytes=_VMEM_LIMIT)

    # --- pass A: pool + conv1 + BN1 partials -------------------------------
    y1, s1, m1 = pl.pallas_call(
        functools.partial(_pool_conv1_kernel, ho=ho, wo=wo, cin=cin, cmid=cmid),
        out_shape=(
            jax.ShapeDtypeStruct((n, ho, wo, cmid), jnp.bfloat16),  # raw conv1 out
            jax.ShapeDtypeStruct((n, 1, cmid), jnp.float32),        # per-tile sum
            jax.ShapeDtypeStruct((n, 1, cmid), jnp.float32),        # per-tile M2
        ),
        grid=(n,),
        in_specs=[
            pl.BlockSpec((None, ho, 2, wo, 2 * cin), lambda i: (i, 0, 0, 0, 0)),
            pl.BlockSpec((9 * cin, cmid), lambda i: (0, 0)),        # resident weight
        ],
        out_specs=(
            pl.BlockSpec((None, ho, wo, cmid), lambda i: (i, 0, 0, 0)),
            pl.BlockSpec((None, 1, cmid), lambda i: (i, 0, 0)),
            pl.BlockSpec((None, 1, cmid), lambda i: (i, 0, 0)),
        ),
        compiler_params=cparams,
    )(xin, w1)

    scale1, shift1 = _finalize_bn(s1, m1, params["g1"], params["b1"],
                                  float(hw), float(n * hw))

    # --- pass B: BN1-apply/ReLU + conv2 + BN2 partials ----------------------
    y2, s2, m2 = pl.pallas_call(
        functools.partial(_bnrelu_conv2_kernel, ho=ho, wo=wo, cmid=cmid, cout=cout),
        out_shape=(
            jax.ShapeDtypeStruct((n, hw, cout), jnp.bfloat16),      # raw conv2 out
            jax.ShapeDtypeStruct((n, 1, cout), jnp.float32),
            jax.ShapeDtypeStruct((n, 1, cout), jnp.float32),
        ),
        grid=(n,),
        in_specs=[
            pl.BlockSpec((None, ho, wo, cmid), lambda i: (i, 0, 0, 0)),
            pl.BlockSpec((1, cmid), lambda i: (0, 0)),
            pl.BlockSpec((1, cmid), lambda i: (0, 0)),
            pl.BlockSpec((9 * cmid, cout), lambda i: (0, 0)),
        ],
        out_specs=(
            pl.BlockSpec((None, hw, cout), lambda i: (i, 0, 0)),
            pl.BlockSpec((None, 1, cout), lambda i: (i, 0, 0)),
            pl.BlockSpec((None, 1, cout), lambda i: (i, 0, 0)),
        ),
        compiler_params=cparams,
    )(y1, scale1, shift1, w2)

    scale2, shift2 = _finalize_bn(s2, m2, params["g2"], params["b2"],
                                  float(hw), float(n * hw))

    # --- pass C: BN2-apply/ReLU + transpose to NCHW -------------------------
    out = pl.pallas_call(
        _bnrelu_to_nchw_kernel,
        out_shape=jax.ShapeDtypeStruct((n, cout, hw), jnp.float32),
        grid=(n,),
        in_specs=[
            pl.BlockSpec((None, hw, cout), lambda i: (i, 0, 0)),
            pl.BlockSpec((1, cout), lambda i: (0, 0)),
            pl.BlockSpec((1, cout), lambda i: (0, 0)),
        ],
        out_specs=pl.BlockSpec((None, cout, hw), lambda i: (i, 0, 0)),
        compiler_params=cparams,
    )(y2, scale2, shift2)

    return out.reshape(n, cout, ho, wo)   # contiguous split of the lane dim


# ---------------------------------------------------------------------------
# Pure-JAX reference (for correctness check)
# ---------------------------------------------------------------------------
def ref_down(x, p):
    x = lax.reduce_window(x, -jnp.inf, lax.max, (1, 1, 2, 2), (1, 1, 2, 2), "VALID")

    def cbr(x, w, g, b):
        y = lax.conv_general_dilated(
            x, w, (1, 1), ((1, 1), (1, 1)),
            dimension_numbers=("NCHW", "OIHW", "NCHW"),
        )
        mean = y.mean(axis=(0, 2, 3), keepdims=True)
        var = ((y - mean) ** 2).mean(axis=(0, 2, 3), keepdims=True)
        y = (y - mean) * lax.rsqrt(var + EPS)
        y = y * g.reshape(1, -1, 1, 1) + b.reshape(1, -1, 1, 1)
        return jnp.maximum(y, 0.0)

    x = cbr(x, p["w1"], p["g1"], p["b1"])
    x = cbr(x, p["w2"], p["g2"], p["b2"])
    return x


if __name__ == "__main__":
    key = jax.random.PRNGKey(0)
    k1, k2, k3, k4, k5, k6, k7 = jax.random.split(key, 7)

    in_channels, out_channels = 4, 8
    mid_channels = out_channels  # DoubleConv default mid_channels
    N, H, W = 2, 16, 16

    x = jax.random.normal(k1, (N, in_channels, H, W), jnp.float32)
    params = {
        "w1": 0.2 * jax.random.normal(k2, (mid_channels, in_channels, 3, 3), jnp.float32),
        "g1": 1.0 + 0.1 * jax.random.normal(k3, (mid_channels,), jnp.float32),
        "b1": 0.1 * jax.random.normal(k4, (mid_channels,), jnp.float32),
        "w2": 0.2 * jax.random.normal(k5, (out_channels, mid_channels, 3, 3), jnp.float32),
        "g2": 1.0 + 0.1 * jax.random.normal(k6, (out_channels,), jnp.float32),
        "b2": 0.1 * jax.random.normal(k7, (out_channels,), jnp.float32),
    }

    out = jax.block_until_ready(jax.jit(down_forward)(x, params))
    ref = jax.block_until_ready(ref_down(x, params))

    assert out.shape == (N, out_channels, H // 2, W // 2), out.shape
    max_err = float(jnp.max(jnp.abs(out - ref)))
    # Tolerance sized for the bf16 MXU feed / bf16 intermediates (f32
    # accumulation and f32 BatchNorm statistics keep the error at ~1e-2).
    assert jnp.allclose(out, ref, atol=6e-2, rtol=6e-2), f"max abs err = {max_err}"
    print("KERNEL_OK")
</pallas_src>

<mosaic_0001>
module attributes {stable_mosaic.version = 11 : i64} {
  func.func @_pool_conv1_kernel(%arg0: i32, %arg1: memref<1x8x2x8x8xbf16, #tpu.memory_space<vmem>>, %arg2: memref<36x8xbf16, #tpu.memory_space<vmem>>, %arg3: memref<1x8x8x8xbf16, #tpu.memory_space<vmem>>, %arg4: memref<1x1x8xf32, #tpu.memory_space<vmem>>, %arg5: memref<1x1x8xf32, #tpu.memory_space<vmem>>) attributes {dimension_semantics = [#tpu.dimension_semantics<parallel>], iteration_bounds = array<i64: 2>, scalar_prefetch = 0 : i64, scratch_operands = 0 : i64, tpu.core_type = #tpu.core_type<tc>, window_params = [{transform_indices = @transform_0, window_bounds = array<i64: 1, 8, 2, 8, 8>}, {pipeline_mode = #tpu.pipeline_mode<synchronous>, transform_indices = @transform_1, window_bounds = array<i64: 36, 8>}, {transform_indices = @transform_2, window_bounds = array<i64: 1, 8, 8, 8>}, {transform_indices = @transform_3, window_bounds = array<i64: 1, 1, 8>}, {transform_indices = @transform_4, window_bounds = array<i64: 1, 1, 8>}]} {
    %c0 = arith.constant 0 : index
    %c0_0 = arith.constant 0 : index
    %c0_1 = arith.constant 0 : index
    %c0_2 = arith.constant 0 : index
    %c0_3 = arith.constant 0 : index
    %0 = vector.load %arg1[%c0, %c0_0, %c0_1, %c0_2, %c0_3] : memref<1x8x2x8x8xbf16, #tpu.memory_space<vmem>>, vector<1x8x2x8x8xbf16>
    %1 = vector.shape_cast %0 : vector<1x8x2x8x8xbf16> to vector<8x2x8x8xbf16>
    %2 = vector.extract_strided_slice %1 {offsets = [0, 0, 0, 0], sizes = [8, 1, 8, 8], strides = [1, 1, 1, 1]} : vector<8x2x8x8xbf16> to vector<8x1x8x8xbf16>
    %3 = vector.shape_cast %2 : vector<8x1x8x8xbf16> to vector<8x8x8xbf16>
    %4 = vector.extract_strided_slice %1 {offsets = [0, 1, 0, 0], sizes = [8, 1, 8, 8], strides = [1, 1, 1, 1]} : vector<8x2x8x8xbf16> to vector<8x1x8x8xbf16>
    %5 = vector.shape_cast %4 : vector<8x1x8x8xbf16> to vector<8x8x8xbf16>
    %6 = arith.maximumf %3, %5 : vector<8x8x8xbf16>
    %7 = vector.extract_strided_slice %6 {offsets = [0, 0, 0], sizes = [8, 8, 4], strides = [1, 1, 1]} : vector<8x8x8xbf16> to vector<8x8x4xbf16>
    %8 = vector.extract_strided_slice %6 {offsets = [0, 0, 4], sizes = [8, 8, 4], strides = [1, 1, 1]} : vector<8x8x8xbf16> to vector<8x8x4xbf16>
    %9 = arith.maximumf %7, %8 : vector<8x8x4xbf16>
    %cst = arith.constant 0.000000e+00 : bf16
    %10 = vector.broadcast %cst : bf16 to vector<1x8x4xbf16>
    %cst_4 = arith.constant 0.000000e+00 : bf16
    %11 = vector.broadcast %cst_4 : bf16 to vector<10x1x4xbf16>
    %12 = tpu.concatenate %10, %9, %10 in 0 : vector<1x8x4xbf16>, vector<8x8x4xbf16>, vector<1x8x4xbf16> -> vector<10x8x4xbf16>
    %13 = tpu.concatenate %11, %12, %11 in 1 : vector<10x1x4xbf16>, vector<10x8x4xbf16>, vector<10x1x4xbf16> -> vector<10x10x4xbf16>
    %c0_5 = arith.constant 0 : index
    %c0_6 = arith.constant 0 : index
    %14 = vector.load %arg2[%c0_5, %c0_6] : memref<36x8xbf16, #tpu.memory_space<vmem>>, vector<36x8xbf16>
    %15 = vector.extract_strided_slice %13 {offsets = [0, 0, 0], sizes = [10, 8, 4], strides = [1, 1, 1]} : vector<10x10x4xbf16> to vector<10x8x4xbf16>
    %16 = vector.extract_strided_slice %13 {offsets = [0, 1, 0], sizes = [10, 8, 4], strides = [1, 1, 1]} : vector<10x10x4xbf16> to vector<10x8x4xbf16>
    %17 = vector.extract_strided_slice %13 {offsets = [0, 2, 0], sizes = [10, 8, 4], strides = [1, 1, 1]} : vector<10x10x4xbf16> to vector<10x8x4xbf16>
    %18 = tpu.concatenate %15, %16, %17 in 2 : vector<10x8x4xbf16>, vector<10x8x4xbf16>, vector<10x8x4xbf16> -> vector<10x8x12xbf16>
    %19 = vector.extract_strided_slice %18 {offsets = [0, 0, 0], sizes = [8, 8, 12], strides = [1, 1, 1]} : vector<10x8x12xbf16> to vector<8x8x12xbf16>
    %20 = vector.extract_strided_slice %18 {offsets = [1, 0, 0], sizes = [8, 8, 12], strides = [1, 1, 1]} : vector<10x8x12xbf16> to vector<8x8x12xbf16>
    %21 = vector.extract_strided_slice %18 {offsets = [2, 0, 0], sizes = [8, 8, 12], strides = [1, 1, 1]} : vector<10x8x12xbf16> to vector<8x8x12xbf16>
    %22 = tpu.concatenate %19, %20, %21 in 2 : vector<8x8x12xbf16>, vector<8x8x12xbf16>, vector<8x8x12xbf16> -> vector<8x8x36xbf16>
    %23 = vector.shape_cast %22 : vector<8x8x36xbf16> to vector<64x36xbf16>
    %cst_7 = arith.constant dense<0.000000e+00> : vector<64x8xf32>
    %24 = tpu.matmul %23, %14, %cst_7 {dimension_numbers = #tpu.dot_dimension_numbers<[1], [0], [0], [1], [0, 0, 1, 1], [], []>} : vector<64x36xbf16>, vector<36x8xbf16>, vector<64x8xf32> -> vector<64x8xf32>
    %cst_8 = arith.constant dense<0.000000e+00> : vector<8xf32>
    %25 = vector.multi_reduction <add>, %24, %cst_8 [0] : vector<64x8xf32> to vector<8xf32>
    %26 = vector.shape_cast %25 : vector<8xf32> to vector<1x8xf32>
    %cst_9 = arith.constant 1.562500e-02 : f32
    %27 = vector.broadcast %cst_9 : f32 to vector<1x8xf32>
    %28 = arith.mulf %26, %27 : vector<1x8xf32>
    %29 = vector.broadcast %28 : vector<1x8xf32> to vector<64x8xf32>
    %30 = arith.subf %24, %29 : vector<64x8xf32>
    %31 = arith.mulf %30, %30 : vector<64x8xf32>
    %cst_10 = arith.constant dense<0.000000e+00> : vector<8xf32>
    %32 = vector.multi_reduction <add>, %31, %cst_10 [0] : vector<64x8xf32> to vector<8xf32>
    %33 = vector.shape_cast %32 : vector<8xf32> to vector<1x8xf32>
    %c0_11 = arith.constant 0 : index
    %c0_12 = arith.constant 0 : index
    %c0_13 = arith.constant 0 : index
    %34 = vector.load %arg4[%c0_11, %c0_12, %c0_13] : memref<1x1x8xf32, #tpu.memory_space<vmem>>, vector<1x1x8xf32>
    %35 = vector.shape_cast %34 : vector<1x1x8xf32> to vector<1x8xf32>
    %36 = vector.shape_cast %26 : vector<1x8xf32> to vector<1x1x8xf32>
    tpu.vector_store %arg4[%c0_11, %c0_12, %c0_13], %36 {strides = array<i32>} : memref<1x1x8xf32, #tpu.memory_space<vmem>>, vector<1x1x8xf32>,
    %c0_14 = arith.constant 0 : index
    %c0_15 = arith.constant 0 : index
    %c0_16 = arith.constant 0 : index
    %37 = vector.load %arg5[%c0_14, %c0_15, %c0_16] : memref<1x1x8xf32, #tpu.memory_space<vmem>>, vector<1x1x8xf32>
    %38 = vector.shape_cast %37 : vector<1x1x8xf32> to vector<1x8xf32>
    %39 = vector.shape_cast %33 : vector<1x8xf32> to vector<1x1x8xf32>
    tpu.vector_store %arg5[%c0_14, %c0_15, %c0_16], %39 {strides = array<i32>} : memref<1x1x8xf32, #tpu.memory_space<vmem>>, vector<1x1x8xf32>,
    %40 = vector.shape_cast %24 : vector<64x8xf32> to vector<8x8x8xf32>
    %41 = arith.truncf %40 : vector<8x8x8xf32> to vector<8x8x8xbf16>
    %c0_17 = arith.constant 0 : index
    %c0_18 = arith.constant 0 : index
    %c0_19 = arith.constant 0 : index
    %c0_20 = arith.constant 0 : index
    %42 = vector.load %arg3[%c0_17, %c0_18, %c0_19, %c0_20] : memref<1x8x8x8xbf16, #tpu.memory_space<vmem>>, vector<1x8x8x8xbf16>
    %43 = vector.shape_cast %42 : vector<1x8x8x8xbf16> to vector<8x8x8xbf16>
    %44 = vector.shape_cast %41 : vector<8x8x8xbf16> to vector<1x8x8x8xbf16>
    tpu.vector_store %arg3[%c0_17, %c0_18, %c0_19, %c0_20], %44 {strides = array<i32>} : memref<1x8x8x8xbf16, #tpu.memory_space<vmem>>, vector<1x8x8x8xbf16>,
    return
  }
  func.func @transform_0(%arg0: i32) -> (i32, i32, i32, i32, i32) {
    %c0_i32 = arith.constant 0 : i32
    %c0_i32_0 = arith.constant 0 : i32
    %c0_i32_1 = arith.constant 0 : i32
    %c0_i32_2 = arith.constant 0 : i32
    %c0_i32_3 = arith.constant 0 : i32
    return %arg0, %c0_i32, %c0_i32_0, %c0_i32_1, %c0_i32_2 : i32, i32, i32, i32, i32
  }
  func.func @transform_1(%arg0: i32) -> (i32, i32) {
    %c0_i32 = arith.constant 0 : i32
    %c0_i32_0 = arith.constant 0 : i32
    %c0_i32_1 = arith.constant 0 : i32
    return %c0_i32, %c0_i32_0 : i32, i32
  }
  func.func @transform_2(%arg0: i32) -> (i32, i32, i32, i32) {
    %c0_i32 = arith.constant 0 : i32
    %c0_i32_0 = arith.constant 0 : i32
    %c0_i32_1 = arith.constant 0 : i32
    %c0_i32_2 = arith.constant 0 : i32
    return %arg0, %c0_i32, %c0_i32_0, %c0_i32_1 : i32, i32, i32, i32
  }
  func.func @transform_3(%arg0: i32) -> (i32, i32, i32) {
    %c0_i32 = arith.constant 0 : i32
    %c0_i32_0 = arith.constant 0 : i32
    %c0_i32_1 = arith.constant 0 : i32
    return %arg0, %c0_i32, %c0_i32_0 : i32, i32, i32
  }
  func.func @transform_4(%arg0: i32) -> (i32, i32, i32) {
    %c0_i32 = arith.constant 0 : i32
    %c0_i32_0 = arith.constant 0 : i32
    %c0_i32_1 = arith.constant 0 : i32
    return %arg0, %c0_i32, %c0_i32_0 : i32, i32, i32
  }
}

module attributes {stable_mosaic.version = 11 : i64} {
  func.func @_bnrelu_to_nchw_kernel(%arg0: i32, %arg1: memref<1x64x8xbf16, #tpu.memory_space<vmem>>, %arg2: memref<1x8xf32, #tpu.memory_space<vmem>>, %arg3: memref<1x8xf32, #tpu.memory_space<vmem>>, %arg4: memref<1x8x64xf32, #tpu.memory_space<vmem>>) attributes {dimension_semantics = [#tpu.dimension_semantics<parallel>], iteration_bounds = array<i64: 2>, scalar_prefetch = 0 : i64, scratch_operands = 0 : i64, tpu.core_type = #tpu.core_type<tc>, window_params = [{transform_indices = @transform_0, window_bounds = array<i64: 1, 64, 8>}, {pipeline_mode = #tpu.pipeline_mode<synchronous>, transform_indices = @transform_1, window_bounds = array<i64: 1, 8>}, {pipeline_mode = #tpu.pipeline_mode<synchronous>, transform_indices = @transform_2, window_bounds = array<i64: 1, 8>}, {transform_indices = @transform_3, window_bounds = array<i64: 1, 8, 64>}]} {
    %c0 = arith.constant 0 : index
    %c0_0 = arith.constant 0 : index
    %c0_1 = arith.constant 0 : index
    %0 = vector.load %arg1[%c0, %c0_0, %c0_1] : memref<1x64x8xbf16, #tpu.memory_space<vmem>>, vector<1x64x8xbf16>
    %1 = vector.shape_cast %0 : vector<1x64x8xbf16> to vector<64x8xbf16>
    %2 = arith.extf %1 : vector<64x8xbf16> to vector<64x8xf32>
    %c0_2 = arith.constant 0 : index
    %c0_3 = arith.constant 0 : index
    %3 = vector.load %arg2[%c0_2, %c0_3] : memref<1x8xf32, #tpu.memory_space<vmem>>, vector<1x8xf32>
    %4 = vector.broadcast %3 : vector<1x8xf32> to vector<64x8xf32>
    %5 = arith.mulf %2, %4 : vector<64x8xf32>
    %c0_4 = arith.constant 0 : index
    %c0_5 = arith.constant 0 : index
    %6 = vector.load %arg3[%c0_4, %c0_5] : memref<1x8xf32, #tpu.memory_space<vmem>>, vector<1x8xf32>
    %7 = vector.broadcast %6 : vector<1x8xf32> to vector<64x8xf32>
    %8 = arith.addf %5, %7 : vector<64x8xf32>
    %cst = arith.constant 0.000000e+00 : f32
    %9 = vector.broadcast %cst : f32 to vector<64x8xf32>
    %10 = arith.maximumf %8, %9 : vector<64x8xf32>
    %11 = tpu.transpose %10, [1, 0] : vector<64x8xf32> -> vector<8x64xf32>
    %c0_6 = arith.constant 0 : index
    %c0_7 = arith.constant 0 : index
    %c0_8 = arith.constant 0 : index
    %12 = vector.load %arg4[%c0_6, %c0_7, %c0_8] : memref<1x8x64xf32, #tpu.memory_space<vmem>>, vector<1x8x64xf32>
    %13 = vector.shape_cast %12 : vector<1x8x64xf32> to vector<8x64xf32>
    %14 = vector.shape_cast %11 : vector<8x64xf32> to vector<1x8x64xf32>
    tpu.vector_store %arg4[%c0_6, %c0_7, %c0_8], %14 {strides = array<i32>} : memref<1x8x64xf32, #tpu.memory_space<vmem>>, vector<1x8x64xf32>,
    return
  }
  func.func @transform_0(%arg0: i32) -> (i32, i32, i32) {
    %c0_i32 = arith.constant 0 : i32
    %c0_i32_0 = arith.constant 0 : i32
    %c0_i32_1 = arith.constant 0 : i32
    return %arg0, %c0_i32, %c0_i32_0 : i32, i32, i32
  }
  func.func @transform_1(%arg0: i32) -> (i32, i32) {
    %c0_i32 = arith.constant 0 : i32
    %c0_i32_0 = arith.constant 0 : i32
    %c0_i32_1 = arith.constant 0 : i32
    return %c0_i32, %c0_i32_0 : i32, i32
  }
  func.func @transform_2(%arg0: i32) -> (i32, i32) {
    %c0_i32 = arith.constant 0 : i32
    %c0_i32_0 = arith.constant 0 : i32
    %c0_i32_1 = arith.constant 0 : i32
    return %c0_i32, %c0_i32_0 : i32, i32
  }
  func.func @transform_3(%arg0: i32) -> (i32, i32, i32) {
    %c0_i32 = arith.constant 0 : i32
    %c0_i32_0 = arith.constant 0 : i32
    %c0_i32_1 = arith.constant 0 : i32
    return %arg0, %c0_i32, %c0_i32_0 : i32, i32, i32
  }
}

module attributes {stable_mosaic.version = 11 : i64} {
  func.func @_bnrelu_conv2_kernel(%arg0: i32, %arg1: memref<1x8x8x8xbf16, #tpu.memory_space<vmem>>, %arg2: memref<1x8xf32, #tpu.memory_space<vmem>>, %arg3: memref<1x8xf32, #tpu.memory_space<vmem>>, %arg4: memref<72x8xbf16, #tpu.memory_space<vmem>>, %arg5: memref<1x64x8xbf16, #tpu.memory_space<vmem>>, %arg6: memref<1x1x8xf32, #tpu.memory_space<vmem>>, %arg7: memref<1x1x8xf32, #tpu.memory_space<vmem>>) attributes {dimension_semantics = [#tpu.dimension_semantics<parallel>], iteration_bounds = array<i64: 2>, scalar_prefetch = 0 : i64, scratch_operands = 0 : i64, tpu.core_type = #tpu.core_type<tc>, window_params = [{transform_indices = @transform_0, window_bounds = array<i64: 1, 8, 8, 8>}, {pipeline_mode = #tpu.pipeline_mode<synchronous>, transform_indices = @transform_1, window_bounds = array<i64: 1, 8>}, {pipeline_mode = #tpu.pipeline_mode<synchronous>, transform_indices = @transform_2, window_bounds = array<i64: 1, 8>}, {pipeline_mode = #tpu.pipeline_mode<synchronous>, transform_indices = @transform_3, window_bounds = array<i64: 72, 8>}, {transform_indices = @transform_4, window_bounds = array<i64: 1, 64, 8>}, {transform_indices = @transform_5, window_bounds = array<i64: 1, 1, 8>}, {transform_indices = @transform_6, window_bounds = array<i64: 1, 1, 8>}]} {
    %c0 = arith.constant 0 : index
    %c0_0 = arith.constant 0 : index
    %c0_1 = arith.constant 0 : index
    %c0_2 = arith.constant 0 : index
    %0 = vector.load %arg1[%c0, %c0_0, %c0_1, %c0_2] : memref<1x8x8x8xbf16, #tpu.memory_space<vmem>>, vector<1x8x8x8xbf16>
    %1 = vector.shape_cast %0 : vector<1x8x8x8xbf16> to vector<8x8x8xbf16>
    %2 = arith.extf %1 : vector<8x8x8xbf16> to vector<8x8x8xf32>
    %c0_3 = arith.constant 0 : index
    %c0_4 = arith.constant 0 : index
    %3 = vector.load %arg2[%c0_3, %c0_4] : memref<1x8xf32, #tpu.memory_space<vmem>>, vector<1x8xf32>
    %4 = vector.shape_cast %3 : vector<1x8xf32> to vector<1x1x8xf32>
    %5 = vector.broadcast %4 : vector<1x1x8xf32> to vector<8x8x8xf32>
    %6 = arith.mulf %2, %5 : vector<8x8x8xf32>
    %c0_5 = arith.constant 0 : index
    %c0_6 = arith.constant 0 : index
    %7 = vector.load %arg3[%c0_5, %c0_6] : memref<1x8xf32, #tpu.memory_space<vmem>>, vector<1x8xf32>
    %8 = vector.shape_cast %7 : vector<1x8xf32> to vector<1x1x8xf32>
    %9 = vector.broadcast %8 : vector<1x1x8xf32> to vector<8x8x8xf32>
    %10 = arith.addf %6, %9 : vector<8x8x8xf32>
    %cst = arith.constant 0.000000e+00 : f32
    %11 = vector.broadcast %cst : f32 to vector<8x8x8xf32>
    %12 = arith.maximumf %10, %11 : vector<8x8x8xf32>
    %13 = arith.truncf %12 : vector<8x8x8xf32> to vector<8x8x8xbf16>
    %cst_7 = arith.constant 0.000000e+00 : bf16
    %14 = vector.broadcast %cst_7 : bf16 to vector<1x8x8xbf16>
    %cst_8 = arith.constant 0.000000e+00 : bf16
    %15 = vector.broadcast %cst_8 : bf16 to vector<10x1x8xbf16>
    %16 = tpu.concatenate %14, %13, %14 in 0 : vector<1x8x8xbf16>, vector<8x8x8xbf16>, vector<1x8x8xbf16> -> vector<10x8x8xbf16>
    %17 = tpu.concatenate %15, %16, %15 in 1 : vector<10x1x8xbf16>, vector<10x8x8xbf16>, vector<10x1x8xbf16> -> vector<10x10x8xbf16>
    %c0_9 = arith.constant 0 : index
    %c0_10 = arith.constant 0 : index
    %18 = vector.load %arg4[%c0_9, %c0_10] : memref<72x8xbf16, #tpu.memory_space<vmem>>, vector<72x8xbf16>
    %19 = vector.extract_strided_slice %17 {offsets = [0, 0, 0], sizes = [10, 8, 8], strides = [1, 1, 1]} : vector<10x10x8xbf16> to vector<10x8x8xbf16>
    %20 = vector.extract_strided_slice %17 {offsets = [0, 1, 0], sizes = [10, 8, 8], strides = [1, 1, 1]} : vector<10x10x8xbf16> to vector<10x8x8xbf16>
    %21 = vector.extract_strided_slice %17 {offsets = [0, 2, 0], sizes = [10, 8, 8], strides = [1, 1, 1]} : vector<10x10x8xbf16> to vector<10x8x8xbf16>
    %22 = tpu.concatenate %19, %20, %21 in 2 : vector<10x8x8xbf16>, vector<10x8x8xbf16>, vector<10x8x8xbf16> -> vector<10x8x24xbf16>
    %23 = vector.extract_strided_slice %22 {offsets = [0, 0, 0], sizes = [8, 8, 24], strides = [1, 1, 1]} : vector<10x8x24xbf16> to vector<8x8x24xbf16>
    %24 = vector.extract_strided_slice %22 {offsets = [1, 0, 0], sizes = [8, 8, 24], strides = [1, 1, 1]} : vector<10x8x24xbf16> to vector<8x8x24xbf16>
    %25 = vector.extract_strided_slice %22 {offsets = [2, 0, 0], sizes = [8, 8, 24], strides = [1, 1, 1]} : vector<10x8x24xbf16> to vector<8x8x24xbf16>
    %26 = tpu.concatenate %23, %24, %25 in 2 : vector<8x8x24xbf16>, vector<8x8x24xbf16>, vector<8x8x24xbf16> -> vector<8x8x72xbf16>
    %27 = vector.shape_cast %26 : vector<8x8x72xbf16> to vector<64x72xbf16>
    %cst_11 = arith.constant dense<0.000000e+00> : vector<64x8xf32>
    %28 = tpu.matmul %27, %18, %cst_11 {dimension_numbers = #tpu.dot_dimension_numbers<[1], [0], [0], [1], [0, 0, 1, 1], [], []>} : vector<64x72xbf16>, vector<72x8xbf16>, vector<64x8xf32> -> vector<64x8xf32>
    %cst_12 = arith.constant dense<0.000000e+00> : vector<8xf32>
    %29 = vector.multi_reduction <add>, %28, %cst_12 [0] : vector<64x8xf32> to vector<8xf32>
    %30 = vector.shape_cast %29 : vector<8xf32> to vector<1x8xf32>
    %cst_13 = arith.constant 1.562500e-02 : f32
    %31 = vector.broadcast %cst_13 : f32 to vector<1x8xf32>
    %32 = arith.mulf %30, %31 : vector<1x8xf32>
    %33 = vector.broadcast %32 : vector<1x8xf32> to vector<64x8xf32>
    %34 = arith.subf %28, %33 : vector<64x8xf32>
    %35 = arith.mulf %34, %34 : vector<64x8xf32>
    %cst_14 = arith.constant dense<0.000000e+00> : vector<8xf32>
    %36 = vector.multi_reduction <add>, %35, %cst_14 [0] : vector<64x8xf32> to vector<8xf32>
    %37 = vector.shape_cast %36 : vector<8xf32> to vector<1x8xf32>
    %c0_15 = arith.constant 0 : index
    %c0_16 = arith.constant 0 : index
    %c0_17 = arith.constant 0 : index
    %38 = vector.load %arg6[%c0_15, %c0_16, %c0_17] : memref<1x1x8xf32, #tpu.memory_space<vmem>>, vector<1x1x8xf32>
    %39 = vector.shape_cast %38 : vector<1x1x8xf32> to vector<1x8xf32>
    %40 = vector.shape_cast %30 : vector<1x8xf32> to vector<1x1x8xf32>
    tpu.vector_store %arg6[%c0_15, %c0_16, %c0_17], %40 {strides = array<i32>} : memref<1x1x8xf32, #tpu.memory_space<vmem>>, vector<1x1x8xf32>,
    %c0_18 = arith.constant 0 : index
    %c0_19 = arith.constant 0 : index
    %c0_20 = arith.constant 0 : index
    %41 = vector.load %arg7[%c0_18, %c0_19, %c0_20] : memref<1x1x8xf32, #tpu.memory_space<vmem>>, vector<1x1x8xf32>
    %42 = vector.shape_cast %41 : vector<1x1x8xf32> to vector<1x8xf32>
    %43 = vector.shape_cast %37 : vector<1x8xf32> to vector<1x1x8xf32>
    tpu.vector_store %arg7[%c0_18, %c0_19, %c0_20], %43 {strides = array<i32>} : memref<1x1x8xf32, #tpu.memory_space<vmem>>, vector<1x1x8xf32>,
    %44 = arith.truncf %28 : vector<64x8xf32> to vector<64x8xbf16>
    %c0_21 = arith.constant 0 : index
    %c0_22 = arith.constant 0 : index
    %c0_23 = arith.constant 0 : index
    %45 = vector.load %arg5[%c0_21, %c0_22, %c0_23] : memref<1x64x8xbf16, #tpu.memory_space<vmem>>, vector<1x64x8xbf16>
    %46 = vector.shape_cast %45 : vector<1x64x8xbf16> to vector<64x8xbf16>
    %47 = vector.shape_cast %44 : vector<64x8xbf16> to vector<1x64x8xbf16>
    tpu.vector_store %arg5[%c0_21, %c0_22, %c0_23], %47 {strides = array<i32>} : memref<1x64x8xbf16, #tpu.memory_space<vmem>>, vector<1x64x8xbf16>,
    return
  }
  func.func @transform_0(%arg0: i32) -> (i32, i32, i32, i32) {
    %c0_i32 = arith.constant 0 : i32
    %c0_i32_0 = arith.constant 0 : i32
    %c0_i32_1 = arith.constant 0 : i32
    %c0_i32_2 = arith.constant 0 : i32
    return %arg0, %c0_i32, %c0_i32_0, %c0_i32_1 : i32, i32, i32, i32
  }
  func.func @transform_1(%arg0: i32) -> (i32, i32) {
    %c0_i32 = arith.constant 0 : i32
    %c0_i32_0 = arith.constant 0 : i32
    %c0_i32_1 = arith.constant 0 : i32
    return %c0_i32, %c0_i32_0 : i32, i32
  }
  func.func @transform_2(%arg0: i32) -> (i32, i32) {
    %c0_i32 = arith.constant 0 : i32
    %c0_i32_0 = arith.constant 0 : i32
    %c0_i32_1 = arith.constant 0 : i32
    return %c0_i32, %c0_i32_0 : i32, i32
  }
  func.func @transform_3(%arg0: i32) -> (i32, i32) {
    %c0_i32 = arith.constant 0 : i32
    %c0_i32_0 = arith.constant 0 : i32
    %c0_i32_1 = arith.constant 0 : i32
    return %c0_i32, %c0_i32_0 : i32, i32
  }
  func.func @transform_4(%arg0: i32) -> (i32, i32, i32) {
    %c0_i32 = arith.constant 0 : i32
    %c0_i32_0 = arith.constant 0 : i32
    %c0_i32_1 = arith.constant 0 : i32
    return %arg0, %c0_i32, %c0_i32_0 : i32, i32, i32
  }
  func.func @transform_5(%arg0: i32) -> (i32, i32, i32) {
    %c0_i32 = arith.constant 0 : i32
    %c0_i32_0 = arith.constant 0 : i32
    %c0_i32_1 = arith.constant 0 : i32
    return %arg0, %c0_i32, %c0_i32_0 : i32, i32, i32
  }
  func.func @transform_6(%arg0: i32) -> (i32, i32, i32) {
    %c0_i32 = arith.constant 0 : i32
    %c0_i32_0 = arith.constant 0 : i32
    %c0_i32_1 = arith.constant 0 : i32
    return %arg0, %c0_i32, %c0_i32_0 : i32, i32, i32
  }
}

</mosaic_0001>

<llo_original>
// kernel: down_forward.5
$region0: #{down_forward.5}
  #allocation0 [shape = 'u32[]', space=smem, size = 0x4, offset = 0x4, fixed_abs, tag = 'smem constant byte address 0x4 - core index']
  #allocation1 [shape = 'u32[144,128]{1,0:T(1,128)}', space=vmem, size = 0x12000, scoped, tag = 'internal scratch']
  %s0 = inlined_call_operand.vmem [shape: bf16[2,64,8], index: 0, kind: input, shape index: {}]
  %s1 = inlined_call_operand.vmem [shape: f32[1,8], index: 1, kind: input, shape index: {}]
  %s2 = inlined_call_operand.vmem [shape: f32[1,8], index: 2, kind: input, shape index: {}]
  %s3 = inlined_call_operand.vmem [shape: f32[2,8,64], index: 3, kind: output, shape index: {}]
  %s4 = sld [smem:[#allocation0]]
  $region45: #{down_forward.5} parent=0
    _
  %s6 = ssub.s32 1, %s4
  %s7 = scalar_select 0, %s6, %s4
  loop: start=0, step=1, limit=4
  $region2: #{down_forward.5} parent=0 // loop_pre_header
    _
  $region3: #{down_forward.5} parent=0 // loop_header
    %s9 = sphi 0, %s13
    %p10 = scmp.ge.s32.totalorder %s9, 4
    %s19 = sphi 0, %s21
    %s22 = sphi 0, %s19
    %s23 = sphi 0, %s22
    %s39 = sphi 0, %s23
    %s43 = sphi 0, %s43
    %s45 = sphi 0, %s43
    %s46 = sphi 0, %s45
    %s60 = sphi 0, %s46
    %s64 = sphi 0, %s64
    %s66 = sphi 0, %s64
    %s67 = sphi 0, %s66
    %s81 = sphi 0, %s67
    %s87 = sphi 0, %s89
    %s90 = sphi 0, %s87
    %s91 = sphi 0, %s90
    %s107 = sphi 0, %s91
  $region4: #{down_forward.5} parent=0 // loop_header_branch
    %12 = sbr.rel (%p10) target = $region8
  $region5: #{down_forward.5} parent=0 // loop_body
    %s14 = ssub.s32 %s9, 1
    %s15 = ssub.s32 %s9, 2
    %s16 = sadd.s32 %s9, 1
    %s17 = ssub.s32 %s9, %s16
    %p18 = scmp.eq.s32.totalorder %s17, 0
    %s20 = sadd.s32 %s19, 1
    %s21 = scalar_select %p18, %s19, %s20
    %p24 = pneg %p18
    %p25 = scmp.eq.s32.totalorder %s9, 1
    %p26 = por %p24, %p25
    %p27 = scmp.ne.s32.totalorder %s19, %s22
    %p28 = scmp.eq.s32.totalorder %s9, 0
    %p29 = por %p27, %p28
    %p30 = scmp.ne.s32.totalorder %s19, %s22
    %p31 = scmp.eq.s32.totalorder %s14, 1
    %p32 = por %p30, %p31
    %p33 = scmp.ne.s32.totalorder %s22, %s23
    %p34 = scmp.eq.s32.totalorder %s14, 0
    %p35 = por %p33, %p34
    %p36 = scmp.ne.s32.totalorder %s22, %s23
    %p37 = scmp.eq.s32.totalorder %s15, 1
    %p38 = por %p36, %p37
    %p40 = scmp.ne.s32.totalorder %s23, %s39
    %p41 = scmp.eq.s32.totalorder %s15, 0
    %p42 = por %p40, %p41
    %s44 = sadd.s32 %s43, 1
    %p47 = scmp.eq.s32.totalorder %s9, 1
    %p48 = scmp.ne.s32.totalorder %s43, %s45
    %p49 = scmp.eq.s32.totalorder %s9, 0
    %p50 = por %p48, %p49
    %p51 = scmp.ne.s32.totalorder %s43, %s45
    %p52 = scmp.eq.s32.totalorder %s14, 1
    %p53 = por %p51, %p52
    %p54 = scmp.ne.s32.totalorder %s45, %s46
    %p55 = scmp.eq.s32.totalorder %s14, 0
    %p56 = por %p54, %p55
    %p57 = scmp.ne.s32.totalorder %s45, %s46
    %p58 = scmp.eq.s32.totalorder %s15, 1
    %p59 = por %p57, %p58
    %p61 = scmp.ne.s32.totalorder %s46, %s60
    %p62 = scmp.eq.s32.totalorder %s15, 0
    %p63 = por %p61, %p62
    %s65 = sadd.s32 %s64, 1
    %p68 = scmp.eq.s32.totalorder %s9, 1
    %p69 = scmp.ne.s32.totalorder %s64, %s66
    %p70 = scmp.eq.s32.totalorder %s9, 0
    %p71 = por %p69, %p70
    %p72 = scmp.ne.s32.totalorder %s64, %s66
    %p73 = scmp.eq.s32.totalorder %s14, 1
    %p74 = por %p72, %p73
    %p75 = scmp.ne.s32.totalorder %s66, %s67
    %p76 = scmp.eq.s32.totalorder %s14, 0
    %p77 = por %p75, %p76
    %p78 = scmp.ne.s32.totalorder %s66, %s67
    %p79 = scmp.eq.s32.totalorder %s15, 1
    %p80 = por %p78, %p79
    %p82 = scmp.ne.s32.totalorder %s67, %s81
    %p83 = scmp.eq.s32.totalorder %s15, 0
    %p84 = por %p82, %p83
    %s85 = ssub.s32 %s9, %s16
    %p86 = scmp.eq.s32.totalorder %s85, 0
    %s88 = sadd.s32 %s87, 1
    %s89 = scalar_select %p86, %s87, %s88
    %p92 = pneg %p86
    %p93 = scmp.eq.s32.totalorder %s9, 1
    %p94 = por %p92, %p93
    %p95 = scmp.ne.s32.totalorder %s87, %s90
    %p96 = scmp.eq.s32.totalorder %s9, 0
    %p97 = por %p95, %p96
    %p98 = scmp.ne.s32.totalorder %s87, %s90
    %p99 = scmp.eq.s32.totalorder %s14, 1
    %p100 = por %p98, %p99
    %p101 = scmp.ne.s32.totalorder %s90, %s91
    %p102 = scmp.eq.s32.totalorder %s14, 0
    %p103 = por %p101, %p102
    %p104 = scmp.ne.s32.totalorder %s90, %s91
    %p105 = scmp.eq.s32.totalorder %s15, 1
    %p106 = por %p104, %p105
    %p108 = scmp.ne.s32.totalorder %s91, %s107
    %p109 = scmp.eq.s32.totalorder %s15, 0
    %p110 = por %p108, %p109
    %p111 = scmp.le.s32.totalorder 1, %s9
    %p112 = scmp.lt.s32.totalorder %s9, 3
    %p113 = pnand %p111, %p112
    %p114 = pneg %p113
    // Predicated region
    $region9: #{down_forward.5} parent=5 // pred_check
      _
    $region10: #{down_forward.5} parent=5 // pred_check_branch
      %116 = sbr.rel (%p113) target = $region12
    $region11: #{down_forward.5} parent=5 // pred_region
      %s117 = ssub.s32 %s9, 1
      // Predicated region
      $region13: #{down_forward.5} parent=11 // pred_check
        %p118 = pneg %p56
      $region14: #{down_forward.5} parent=11 // pred_check_branch
        %120 = sbr.rel (%p118) target = $region16
      $region15: #{down_forward.5} parent=11 // pred_region
        _
      $region16: #{down_forward.5} parent=11 // pred_fallthru
        _
      // Predicated region
      $region17: #{down_forward.5} parent=11 // pred_check
        %p121 = pneg %p77
      $region18: #{down_forward.5} parent=11 // pred_check_branch
        %123 = sbr.rel (%p121) target = $region20
      $region19: #{down_forward.5} parent=11 // pred_region
        _
      $region20: #{down_forward.5} parent=11 // pred_fallthru
        _
    $region12: #{down_forward.5} parent=5 // pred_fallthru
      _
    %p124 = scmp.lt.s32.totalorder %s9, 2
    // Predicated region
    $region21: #{down_forward.5} parent=5 // pred_check
      %p125 = pneg %p124
    $region22: #{down_forward.5} parent=5 // pred_check_branch
      %127 = sbr.rel (%p125) target = $region24
    $region23: #{down_forward.5} parent=5 // pred_region
      // Predicated region
      $region25: #{down_forward.5} parent=23 // pred_check
        %p128 = pneg %p29
      $region26: #{down_forward.5} parent=23 // pred_check_branch
        %130 = sbr.rel (%p128) target = $region28
      $region27: #{down_forward.5} parent=23 // pred_region
        %p131 = scmp.lt.s32.totalorder %s9, 1
        %s132 = scalar_select %p131, %s9, 1
        %s133 = smul.addr %s132, 8
        %s134 = smul.addr %s133, 4
        %s135 = scalar_lea.vmem %s0, %s134
      $region28: #{down_forward.5} parent=23 // pred_fallthru
        _
    $region24: #{down_forward.5} parent=5 // pred_fallthru
      _
    %p136 = scmp.le.s32.totalorder 1, %s9
    %p137 = scmp.lt.s32.totalorder %s9, 3
    %p138 = pnand %p136, %p137
    %p139 = pneg %p138
    // Predicated region
    $region29: #{down_forward.5} parent=5 // pred_check
      _
    $region30: #{down_forward.5} parent=5 // pred_check_branch
      %141 = sbr.rel (%p138) target = $region32
    $region31: #{down_forward.5} parent=5 // pred_region
      %s142 = ssub.s32 %s9, 1
      %p143 = scmp.lt.s32.totalorder %s14, 1
      %s144 = scalar_select %p143, %s14, 1
      %s145 = smul.addr %s144, 8
      %s146 = smul.addr %s145, 4
      %s147 = scalar_lea.vmem %s0, %s146
      %p148 = pneg %p35
      %p149 = pneg %p32
      %p150 = pneg %p56
      %p151 = pneg %p53
      %p152 = pneg %p77
      %p153 = pneg %p74
      %p154 = pneg %p103
      %p155 = pneg %p100
      %p156 = scmp.lt.s32.totalorder %s14, 1
      %s157 = scalar_select %p156, %s14, 1
      %s158 = smul.addr %s157, 8
      %s159 = scalar_lea.vmem %s3, %s158
      %p160 = scmp.lt.s32.totalorder %s14, 1
      %s161 = scalar_select %p160, %s14, 1
      %s162 = smul.addr %s161, 8
      %s163 = smul.addr %s162, 4
      %s164 = scalar_lea.vmem %s0, %s163
      %p165 = scmp.lt.s32.totalorder %s14, 1
      %s166 = scalar_select %p165, %s14, 1
      %s167 = smul.addr %s166, 8
      %s168 = scalar_lea.vmem %s3, %s167
      %v169 = vld [vmem:[%s164] sm:$0xf]
      %v170 = vld [vmem:[%s164 + $0x4] sm:$0xf]
      %v171 = vld [vmem:[%s164 + $0x8] sm:$0xf]
      %v172 = vld [vmem:[%s164 + $0xc] sm:$0xf]
      %v173 = vld [vmem:[%s164 + $0x10] sm:$0xf]
      %v174 = vld [vmem:[%s164 + $0x14] sm:$0xf]
      %v175 = vld [vmem:[%s164 + $0x18] sm:$0xf]
      %v176 = vld [vmem:[%s164 + $0x1c] sm:$0xf]
      %v177 = vunpack.c.l.bf16 %v169
      %v178 = vunpack.c.l.bf16 %v170
      %v179 = vunpack.c.l.bf16 %v171
      %v180 = vunpack.c.l.bf16 %v172
      %v181 = vunpack.c.l.bf16 %v173
      %v182 = vunpack.c.l.bf16 %v174
      %v183 = vunpack.c.l.bf16 %v175
      %v184 = vunpack.c.l.bf16 %v176
      %v185 = vld [vmem:[%s1] sm:$0x1]
      %v187 = vlaneseq
      %v188 = vshrl.u32 %v187, 7
      %v189 = vsub.s32 0, %v188
      %v190 = vrot.slane %v185, %v189
      %v192 = vmul.f32 %v177, %v190
      %v193 = vmul.f32 %v178, %v190
      %v194 = vmul.f32 %v179, %v190
      %v195 = vmul.f32 %v180, %v190
      %v196 = vmul.f32 %v181, %v190
      %v197 = vmul.f32 %v182, %v190
      %v198 = vmul.f32 %v183, %v190
      %v199 = vmul.f32 %v184, %v190
      %v200 = vld [vmem:[%s2] sm:$0x1]
      %v202 = vlaneseq
      %v203 = vshrl.u32 %v202, 7
      %v204 = vsub.s32 0, %v203
      %v205 = vrot.slane %v200, %v204
      %v207 = vadd.f32 %v192, %v205
      %v208 = vadd.f32 %v193, %v205
      %v209 = vadd.f32 %v194, %v205
      %v210 = vadd.f32 %v195, %v205
      %v211 = vadd.f32 %v196, %v205
      %v212 = vadd.f32 %v197, %v205
      %v213 = vadd.f32 %v198, %v205
      %v214 = vadd.f32 %v199, %v205
      %v215 = vmax.f32 %v207, 0.0
      %v216 = vmax.f32 %v208, 0.0
      %v217 = vmax.f32 %v209, 0.0
      %v218 = vmax.f32 %v210, 0.0
      %v219 = vmax.f32 %v211, 0.0
      %v220 = vmax.f32 %v212, 0.0
      %v221 = vmax.f32 %v213, 0.0
      %v222 = vmax.f32 %v214, 0.0
      %223 = vxpose.xlu0.b32.start [1/16] %v215, 128
      %224 = vxpose.xlu0.b32.cont [2/16] %v216, 128
      %225 = vxpose.xlu0.b32.cont [3/16] %v217, 128
      %226 = vxpose.xlu0.b32.cont [4/16] %v218, 128
      %227 = vxpose.xlu0.b32.cont [5/16] %v219, 128
      %228 = vxpose.xlu0.b32.cont [6/16] %v220, 128
      %229 = vxpose.xlu0.b32.cont [7/16] %v221, 128
      %230 = vxpose.xlu0.b32.cont [8/16] %v222, 128
      %231 = vxpose.xlu0.b32.cont [9/16] 0.0, 128
      %232 = vxpose.xlu0.b32.cont [10/16] 0.0, 128
      %233 = vxpose.xlu0.b32.cont [11/16] 0.0, 128
      %234 = vxpose.xlu0.b32.cont [12/16] 0.0, 128
      %235 = vxpose.xlu0.b32.cont [13/16] 0.0, 128
      %236 = vxpose.xlu0.b32.cont [14/16] 0.0, 128
      %237 = vxpose.xlu0.b32.cont [15/16] 0.0, 128
      %238 = vxpose.xlu0.b32.end [16/16] 0.0, 128
      %v239 = vpop.trf.xlu0
      %v240 = vpop.trf.xlu0
      %v241 = vpop.trf.xlu0
      %v242 = vpop.trf.xlu0
      %v243 = vpop.trf.xlu0
      %v244 = vpop.trf.xlu0
      %v245 = vpop.trf.xlu0
      %v246 = vpop.trf.xlu0
      %v247 = vpop.trf.xlu0
      %v248 = vpop.trf.xlu0
      %v249 = vpop.trf.xlu0
      %v250 = vpop.trf.xlu0
      %v251 = vpop.trf.xlu0
      %v252 = vpop.trf.xlu0
      %v253 = vpop.trf.xlu0
      %v254 = vpop.trf.xlu0
      %vm255 = vcmask 523264
      %256 = vst.msk [vmem:[%s168] sm:$0xff] %vm255, %v239
      %p257 = scmp.lt.s32.totalorder %s14, 1
      %s258 = scalar_select %p257, %s14, 1
      %s259 = smul.addr %s258, 8
      %s260 = scalar_lea.vmem %s3, %s259
      // Predicated region
      $region33: #{down_forward.5} parent=31 // pred_check
        %p261 = pneg %p100
      $region34: #{down_forward.5} parent=31 // pred_check_branch
        %263 = sbr.rel (%p261) target = $region36
      $region35: #{down_forward.5} parent=31 // pred_region
        _
      $region36: #{down_forward.5} parent=31 // pred_fallthru
        _
    $region32: #{down_forward.5} parent=5 // pred_fallthru
      _
    %p264 = scmp.le.s32.totalorder 2, %s9
    // Predicated region
    $region37: #{down_forward.5} parent=5 // pred_check
      %p265 = pneg %p264
    $region38: #{down_forward.5} parent=5 // pred_check_branch
      %267 = sbr.rel (%p265) target = $region40
    $region39: #{down_forward.5} parent=5 // pred_region
      %s268 = ssub.s32 %s9, 2
      // Predicated region
      $region41: #{down_forward.5} parent=39 // pred_check
        %p269 = pneg %p106
      $region42: #{down_forward.5} parent=39 // pred_check_branch
        %271 = sbr.rel (%p269) target = $region44
      $region43: #{down_forward.5} parent=39 // pred_region
        %p272 = scmp.lt.s32.totalorder %s15, 1
        %s273 = scalar_select %p272, %s15, 1
        %s274 = smul.addr %s273, 8
        %s275 = scalar_lea.vmem %s3, %s274
      $region44: #{down_forward.5} parent=39 // pred_fallthru
        _
    $region40: #{down_forward.5} parent=5 // pred_fallthru
      _
  $region6: #{down_forward.5} parent=0 // loop_footer
    %s13 = sadd.s32 1, %s9
  $region7: #{down_forward.5} parent=0 // loop_footer_branch
    %8 = sbr.rel target = $region3
  $region8: #{down_forward.5} parent=0 // loop_exit
    _

// kernel: down_forward.3
$region0: #{down_forward.3}
  #allocation0 [shape = 'u32[]', space=smem, size = 0x4, offset = 0x4, fixed_abs, tag = 'smem constant byte address 0x4 - core index']
  #allocation1 [shape = 'u32[144,128]{1,0:T(1,128)}', space=vmem, size = 0x12000, scoped, tag = 'internal scratch']
  %s0 = inlined_call_operand.vmem [shape: bf16[2,8,2,8,8], index: 0, kind: input, shape index: {}]
  %s1 = inlined_call_operand.vmem [shape: bf16[36,8], index: 1, kind: input, shape index: {}]
  %s2 = inlined_call_operand.vmem [shape: bf16[2,8,8,8], index: 2, kind: output, shape index: {0}]
  %s3 = inlined_call_operand.vmem [shape: f32[2,1,8], index: 3, kind: output, shape index: {1}]
  %s4 = inlined_call_operand.vmem [shape: f32[2,1,8], index: 4, kind: output, shape index: {2}]
  %5 = xla_tuple %s2, %s3, %s4
  %s6 = sld [smem:[#allocation0]]
  $region57: #{down_forward.3} parent=0
    _
  %s8 = ssub.s32 1, %s6
  %s9 = scalar_select 0, %s8, %s6
  loop: start=0, step=1, limit=4
  $region2: #{down_forward.3} parent=0 // loop_pre_header
    _
  $region3: #{down_forward.3} parent=0 // loop_header
    %s11 = sphi 0, %s15
    %p12 = scmp.ge.s32.totalorder %s11, 4
    %s21 = sphi 0, %s23
    %s24 = sphi 0, %s21
    %s25 = sphi 0, %s24
    %s41 = sphi 0, %s25
    %s45 = sphi 0, %s45
    %s47 = sphi 0, %s45
    %s48 = sphi 0, %s47
    %s62 = sphi 0, %s48
    %s68 = sphi 0, %s70
    %s71 = sphi 0, %s68
    %s72 = sphi 0, %s71
    %s88 = sphi 0, %s72
    %s94 = sphi 0, %s96
    %s97 = sphi 0, %s94
    %s98 = sphi 0, %s97
    %s114 = sphi 0, %s98
    %s120 = sphi 0, %s122
    %s123 = sphi 0, %s120
    %s124 = sphi 0, %s123
    %s140 = sphi 0, %s124
  $region4: #{down_forward.3} parent=0 // loop_header_branch
    %14 = sbr.rel (%p12) target = $region8
  $region5: #{down_forward.3} parent=0 // loop_body
    %s16 = ssub.s32 %s11, 1
    %s17 = ssub.s32 %s11, 2
    %s18 = sadd.s32 %s11, 1
    %s19 = ssub.s32 %s11, %s18
    %p20 = scmp.eq.s32.totalorder %s19, 0
    %s22 = sadd.s32 %s21, 1
    %s23 = scalar_select %p20, %s21, %s22
    %p26 = pneg %p20
    %p27 = scmp.eq.s32.totalorder %s11, 1
    %p28 = por %p26, %p27
    %p29 = scmp.ne.s32.totalorder %s21, %s24
    %p30 = scmp.eq.s32.totalorder %s11, 0
    %p31 = por %p29, %p30
    %p32 = scmp.ne.s32.totalorder %s21, %s24
    %p33 = scmp.eq.s32.totalorder %s16, 1
    %p34 = por %p32, %p33
    %p35 = scmp.ne.s32.totalorder %s24, %s25
    %p36 = scmp.eq.s32.totalorder %s16, 0
    %p37 = por %p35, %p36
    %p38 = scmp.ne.s32.totalorder %s24, %s25
    %p39 = scmp.eq.s32.totalorder %s17, 1
    %p40 = por %p38, %p39
    %p42 = scmp.ne.s32.totalorder %s25, %s41
    %p43 = scmp.eq.s32.totalorder %s17, 0
    %p44 = por %p42, %p43
    %s46 = sadd.s32 %s45, 1
    %p49 = scmp.eq.s32.totalorder %s11, 1
    %p50 = scmp.ne.s32.totalorder %s45, %s47
    %p51 = scmp.eq.s32.totalorder %s11, 0
    %p52 = por %p50, %p51
    %p53 = scmp.ne.s32.totalorder %s45, %s47
    %p54 = scmp.eq.s32.totalorder %s16, 1
    %p55 = por %p53, %p54
    %p56 = scmp.ne.s32.totalorder %s47, %s48
    %p57 = scmp.eq.s32.totalorder %s16, 0
    %p58 = por %p56, %p57
    %p59 = scmp.ne.s32.totalorder %s47, %s48
    %p60 = scmp.eq.s32.totalorder %s17, 1
    %p61 = por %p59, %p60
    %p63 = scmp.ne.s32.totalorder %s48, %s62
    %p64 = scmp.eq.s32.totalorder %s17, 0
    %p65 = por %p63, %p64
    %s66 = ssub.s32 %s11, %s18
    %p67 = scmp.eq.s32.totalorder %s66, 0
    %s69 = sadd.s32 %s68, 1
    %s70 = scalar_select %p67, %s68, %s69
    %p73 = pneg %p67
    %p74 = scmp.eq.s32.totalorder %s11, 1
    %p75 = por %p73, %p74
    %p76 = scmp.ne.s32.totalorder %s68, %s71
    %p77 = scmp.eq.s32.totalorder %s11, 0
    %p78 = por %p76, %p77
    %p79 = scmp.ne.s32.totalorder %s68, %s71
    %p80 = scmp.eq.s32.totalorder %s16, 1
    %p81 = por %p79, %p80
    %p82 = scmp.ne.s32.totalorder %s71, %s72
    %p83 = scmp.eq.s32.totalorder %s16, 0
    %p84 = por %p82, %p83
    %p85 = scmp.ne.s32.totalorder %s71, %s72
    %p86 = scmp.eq.s32.totalorder %s17, 1
    %p87 = por %p85, %p86
    %p89 = scmp.ne.s32.totalorder %s72, %s88
    %p90 = scmp.eq.s32.totalorder %s17, 0
    %p91 = por %p89, %p90
    %s92 = ssub.s32 %s11, %s18
    %p93 = scmp.eq.s32.totalorder %s92, 0
    %s95 = sadd.s32 %s94, 1
    %s96 = scalar_select %p93, %s94, %s95
    %p99 = pneg %p93
    %p100 = scmp.eq.s32.totalorder %s11, 1
    %p101 = por %p99, %p100
    %p102 = scmp.ne.s32.totalorder %s94, %s97
    %p103 = scmp.eq.s32.totalorder %s11, 0
    %p104 = por %p102, %p103
    %p105 = scmp.ne.s32.totalorder %s94, %s97
    %p106 = scmp.eq.s32.totalorder %s16, 1
    %p107 = por %p105, %p106
    %p108 = scmp.ne.s32.totalorder %s97, %s98
    %p109 = scmp.eq.s32.totalorder %s16, 0
    %p110 = por %p108, %p109
    %p111 = scmp.ne.s32.totalorder %s97, %s98
    %p112 = scmp.eq.s32.totalorder %s17, 1
    %p113 = por %p111, %p112
    %p115 = scmp.ne.s32.totalorder %s98, %s114
    %p116 = scmp.eq.s32.totalorder %s17, 0
    %p117 = por %p115, %p116
    %s118 = ssub.s32 %s11, %s18
    %p119 = scmp.eq.s32.totalorder %s118, 0
    %s121 = sadd.s32 %s120, 1
    %s122 = scalar_select %p119, %s120, %s121
    %p125 = pneg %p119
    %p126 = scmp.eq.s32.totalorder %s11, 1
    %p127 = por %p125, %p126
    %p128 = scmp.ne.s32.totalorder %s120, %s123
    %p129 = scmp.eq.s32.totalorder %s11, 0
    %p130 = por %p128, %p129
    %p131 = scmp.ne.s32.totalorder %s120, %s123
    %p132 = scmp.eq.s32.totalorder %s16, 1
    %p133 = por %p131, %p132
    %p134 = scmp.ne.s32.totalorder %s123, %s124
    %p135 = scmp.eq.s32.totalorder %s16, 0
    %p136 = por %p134, %p135
    %p137 = scmp.ne.s32.totalorder %s123, %s124
    %p138 = scmp.eq.s32.totalorder %s17, 1
    %p139 = por %p137, %p138
    %p141 = scmp.ne.s32.totalorder %s124, %s140
    %p142 = scmp.eq.s32.totalorder %s17, 0
    %p143 = por %p141, %p142
    %p144 = scmp.le.s32.totalorder 1, %s11
    %p145 = scmp.lt.s32.totalorder %s11, 3
    %p146 = pnand %p144, %p145
    %p147 = pneg %p146
    // Predicated region
    $region9: #{down_forward.3} parent=5 // pred_check
      _
    $region10: #{down_forward.3} parent=5 // pred_check_branch
      %149 = sbr.rel (%p146) target = $region12
    $region11: #{down_forward.3} parent=5 // pred_region
      %s150 = ssub.s32 %s11, 1
      // Predicated region
      $region13: #{down_forward.3} parent=11 // pred_check
        %p151 = pneg %p58
      $region14: #{down_forward.3} parent=11 // pred_check_branch
        %153 = sbr.rel (%p151) target = $region16
      $region15: #{down_forward.3} parent=11 // pred_region
        _
      $region16: #{down_forward.3} parent=11 // pred_fallthru
        _
    $region12: #{down_forward.3} parent=5 // pred_fallthru
      _
    %p154 = scmp.lt.s32.totalorder %s11, 2
    // Predicated region
    $region17: #{down_forward.3} parent=5 // pred_check
      %p155 = pneg %p154
    $region18: #{down_forward.3} parent=5 // pred_check_branch
      %157 = sbr.rel (%p155) target = $region20
    $region19: #{down_forward.3} parent=5 // pred_region
      // Predicated region
      $region21: #{down_forward.3} parent=19 // pred_check
        %p158 = pneg %p31
      $region22: #{down_forward.3} parent=19 // pred_check_branch
        %160 = sbr.rel (%p158) target = $region24
      $region23: #{down_forward.3} parent=19 // pred_region
        %p161 = scmp.lt.s32.totalorder %s11, 1
        %s162 = scalar_select %p161, %s11, 1
        %s163 = smul.addr %s162, 16
        %s164 = smul.addr %s163, 4
        %s165 = scalar_lea.vmem %s0, %s164
      $region24: #{down_forward.3} parent=19 // pred_fallthru
        _
    $region20: #{down_forward.3} parent=5 // pred_fallthru
      _
    %p166 = scmp.le.s32.totalorder 1, %s11
    %p167 = scmp.lt.s32.totalorder %s11, 3
    %p168 = pnand %p166, %p167
    %p169 = pneg %p168
    // Predicated region
    $region25: #{down_forward.3} parent=5 // pred_check
      _
    $region26: #{down_forward.3} parent=5 // pred_check_branch
      %171 = sbr.rel (%p168) target = $region28
    $region27: #{down_forward.3} parent=5 // pred_region
      %s172 = ssub.s32 %s11, 1
      %p173 = scmp.lt.s32.totalorder %s16, 1
      %s174 = scalar_select %p173, %s16, 1
      %s175 = smul.addr %s174, 16
      %s176 = smul.addr %s175, 4
      %s177 = scalar_lea.vmem %s0, %s176
      %p178 = pneg %p37
      %p179 = pneg %p34
      %p180 = pneg %p58
      %p181 = pneg %p55
      %p182 = pneg %p84
      %p183 = pneg %p81
      %p184 = scmp.lt.s32.totalorder %s16, 1
      %s185 = scalar_select %p184, %s16, 1
      %s186 = smul.addr %s185, 8
      %s187 = smul.addr %s186, 4
      %s188 = scalar_lea.vmem %s2, %s187
      %p189 = pneg %p110
      %p190 = pneg %p107
      %p191 = scmp.lt.s32.totalorder %s16, 1
      %s192 = scalar_select %p191, %s16, 1
      %s193 = scalar_lea.vmem %s3, %s192
      %p194 = pneg %p136
      %p195 = pneg %p133
      %p196 = scmp.lt.s32.totalorder %s16, 1
      %s197 = scalar_select %p196, %s16, 1
      %s198 = scalar_lea.vmem %s4, %s197
      %p199 = scmp.lt.s32.totalorder %s16, 1
      %s200 = scalar_select %p199, %s16, 1
      %s201 = smul.addr %s200, 16
      %s202 = smul.addr %s201, 4
      %s203 = scalar_lea.vmem %s0, %s202
      %p204 = scmp.lt.s32.totalorder %s16, 1
      %s205 = scalar_select %p204, %s16, 1
      %s206 = smul.addr %s205, 8
      %s207 = smul.addr %s206, 4
      %s208 = scalar_lea.vmem %s2, %s207
      %p209 = scmp.lt.s32.totalorder %s16, 1
      %s210 = scalar_select %p209, %s16, 1
      %s211 = scalar_lea.vmem %s3, %s210
      %p212 = scmp.lt.s32.totalorder %s16, 1
      %s213 = scalar_select %p212, %s16, 1
      %s214 = scalar_lea.vmem %s4, %s213
      %v216 = vld [vmem:[%s203] sm:$0xf]
      %v217 = vld [vmem:[%s203 + $0x4] sm:$0xf]
      %v218 = vld [vmem:[%s203 + $0x8] sm:$0xf]
      %v219 = vld [vmem:[%s203 + $0xc] sm:$0xf]
      %v220 = vld [vmem:[%s203 + $0x10] sm:$0xf]
      %v221 = vld [vmem:[%s203 + $0x14] sm:$0xf]
      %v222 = vld [vmem:[%s203 + $0x18] sm:$0xf]
      %v223 = vld [vmem:[%s203 + $0x1c] sm:$0xf]
      %v224 = vld [vmem:[%s203 + $0x20] sm:$0xf]
      %v225 = vld [vmem:[%s203 + $0x24] sm:$0xf]
      %v226 = vld [vmem:[%s203 + $0x28] sm:$0xf]
      %v227 = vld [vmem:[%s203 + $0x2c] sm:$0xf]
      %v228 = vld [vmem:[%s203 + $0x30] sm:$0xf]
      %v229 = vld [vmem:[%s203 + $0x34] sm:$0xf]
      %v230 = vld [vmem:[%s203 + $0x38] sm:$0xf]
      %v231 = vld [vmem:[%s203 + $0x3c] sm:$0xf]
      %v232 = vmax.bf16 %v216, %v217
      %v233 = vmax.bf16 %v218, %v219
      %v234 = vmax.bf16 %v220, %v221
      %v235 = vmax.bf16 %v222, %v223
      %v236 = vmax.bf16 %v224, %v225
      %v237 = vmax.bf16 %v226, %v227
      %v238 = vmax.bf16 %v228, %v229
      %v239 = vmax.bf16 %v230, %v231
      %248 = vrot.lane.b32.xlu0 %v232, 124
      %v249 = vpop.permute.xlu0 %248
      %250 = vrot.lane.b32.xlu0 %v233, 124
      %v251 = vpop.permute.xlu0 %250
      %252 = vrot.lane.b32.xlu0 %v234, 124
      %v253 = vpop.permute.xlu0 %252
      %254 = vrot.lane.b32.xlu0 %v235, 124
      %v255 = vpop.permute.xlu0 %254
      %256 = vrot.lane.b32.xlu0 %v236, 124
      %v257 = vpop.permute.xlu0 %256
      %258 = vrot.lane.b32.xlu0 %v237, 124
      %v259 = vpop.permute.xlu0 %258
      %260 = vrot.lane.b32.xlu0 %v238, 124
      %v261 = vpop.permute.xlu0 %260
      %262 = vrot.lane.b32.xlu0 %v239, 124
      %v263 = vpop.permute.xlu0 %262
      %v272 = vmax.bf16 %v232, %v249
      %v273 = vmax.bf16 %v233, %v251
      %v274 = vmax.bf16 %v234, %v253
      %v275 = vmax.bf16 %v235, %v255
      %v276 = vmax.bf16 %v236, %v257
      %v277 = vmax.bf16 %v237, %v259
      %v278 = vmax.bf16 %v238, %v261
      %v279 = vmax.bf16 %v239, %v263
      %v281 = vshrl.u32 0, 16
      %v283 = vrot.slane %v281, 7
      %v284 = vshll.u32 0, 16
      %v286 = vor.u32 %v283, %v284
      %v288 = vshrl.u32 %v272, 16
      %v290 = vrot.slane %v288, 7
      %v291 = vshll.u32 %v272, 16
      %v293 = vor.u32 %v290, %v291
      %v295 = vshrl.u32 %v273, 16
      %v297 = vrot.slane %v295, 7
      %v298 = vshll.u32 %v273, 16
      %v300 = vor.u32 %v297, %v298
      %v302 = vshrl.u32 %v274, 16
      %v304 = vrot.slane %v302, 7
      %v305 = vshll.u32 %v274, 16
      %v307 = vor.u32 %v304, %v305
      %v309 = vshrl.u32 %v275, 16
      %v311 = vrot.slane %v309, 7
      %v312 = vshll.u32 %v275, 16
      %v314 = vor.u32 %v311, %v312
      %v316 = vshrl.u32 %v276, 16
      %v318 = vrot.slane %v316, 7
      %v319 = vshll.u32 %v276, 16
      %v321 = vor.u32 %v318, %v319
      %v323 = vshrl.u32 %v277, 16
      %v325 = vrot.slane %v323, 7
      %v326 = vshll.u32 %v277, 16
      %v328 = vor.u32 %v325, %v326
      %v330 = vshrl.u32 %v278, 16
      %v332 = vrot.slane %v330, 7
      %v333 = vshll.u32 %v278, 16
      %v335 = vor.u32 %v332, %v333
      %v337 = vshrl.u32 %v279, 16
      %v339 = vrot.slane %v337, 7
      %v340 = vshll.u32 %v279, 16
      %v342 = vor.u32 %v339, %v340
      %vm352 = vcmask 1040384
      %vm353 = vsmask.f32 256
      %vm354 = vmand %vm352, %vm353
      %v355 = vsel %vm354, 0, %v286
      %v356 = vsel %vm354, 0, %v293
      %v357 = vsel %vm354, 0, %v300
      %v358 = vsel %vm354, 0, %v307
      %v359 = vsel %vm354, 0, %v314
      %v360 = vsel %vm354, 0, %v321
      %v361 = vsel %vm354, 0, %v328
      %v362 = vsel %vm354, 0, %v335
      %v363 = vsel %vm354, 0, %v342
      %vm364 = vcmask 1044480
      %vm365 = vsmask.f32 4352
      %vm366 = vmand %vm364, %vm365
      %v367 = vsel %vm366, %v355, 0
      %v368 = vsel %vm366, %v356, 0
      %v369 = vsel %vm366, %v357, 0
      %v370 = vsel %vm366, %v358, 0
      %v371 = vsel %vm366, %v359, 0
      %v372 = vsel %vm366, %v360, 0
      %v373 = vsel %vm366, %v361, 0
      %v374 = vsel %vm366, %v362, 0
      %v375 = vsel %vm366, %v363, 0
      %v376 = vld [vmem:[%s1] sm:$0xf]
      %v377 = vld [vmem:[%s1 + $0x4] sm:$0xf]
      %v378 = vld [vmem:[%s1 + $0x8] sm:$0xf]
      %v379 = vld [vmem:[%s1 + $0xc] sm:$0xf]
      %v380 = vld [vmem:[%s1 + $0x10] sm:$0x3]
      %v382 = vshrl.u32 %v367, 16
      %v384 = vshll.u32 %v367, 16
      %v386 = vrot.slane %v384, 1
      %v387 = vor.u32 %v382, %v386
      %v389 = vshrl.u32 %v368, 16
      %v391 = vshll.u32 %v368, 16
      %v393 = vrot.slane %v391, 1
      %v394 = vor.u32 %v389, %v393
      %v396 = vshrl.u32 %v369, 16
      %v398 = vshll.u32 %v369, 16
      %v400 = vrot.slane %v398, 1
      %v401 = vor.u32 %v396, %v400
      %v403 = vshrl.u32 %v370, 16
      %v405 = vshll.u32 %v370, 16
      %v407 = vrot.slane %v405, 1
      %v408 = vor.u32 %v403, %v407
      %v410 = vshrl.u32 %v371, 16
      %v412 = vshll.u32 %v371, 16
      %v414 = vrot.slane %v412, 1
      %v415 = vor.u32 %v410, %v414
      %v417 = vshrl.u32 %v372, 16
      %v419 = vshll.u32 %v372, 16
      %v421 = vrot.slane %v419, 1
      %v422 = vor.u32 %v417, %v421
      %v424 = vshrl.u32 %v373, 16
      %v426 = vshll.u32 %v373, 16
      %v428 = vrot.slane %v426, 1
      %v429 = vor.u32 %v424, %v428
      %v431 = vshrl.u32 %v374, 16
      %v433 = vshll.u32 %v374, 16
      %v435 = vrot.slane %v433, 1
      %v436 = vor.u32 %v431, %v435
      %v438 = vshrl.u32 %v375, 16
      %v440 = vshll.u32 %v375, 16
      %v442 = vrot.slane %v440, 1
      %v443 = vor.u32 %v438, %v442
      %444 = vrot.lane.b32.xlu0 %v387, 4
      %v445 = vpop.permute.xlu0 %444
      %446 = vrot.lane.b32.xlu0 %v394, 4
      %v447 = vpop.permute.xlu0 %446
      %448 = vrot.lane.b32.xlu0 %v401, 4
      %v449 = vpop.permute.xlu0 %448
      %450 = vrot.lane.b32.xlu0 %v408, 4
      %v451 = vpop.permute.xlu0 %450
      %452 = vrot.lane.b32.xlu0 %v415, 4
      %v453 = vpop.permute.xlu0 %452
      %454 = vrot.lane.b32.xlu0 %v422, 4
      %v455 = vpop.permute.xlu0 %454
      %456 = vrot.lane.b32.xlu0 %v429, 4
      %v457 = vpop.permute.xlu0 %456
      %458 = vrot.lane.b32.xlu0 %v436, 4
      %v459 = vpop.permute.xlu0 %458
      %460 = vrot.lane.b32.xlu0 %v443, 4
      %v461 = vpop.permute.xlu0 %460
      %v471 = vrot.slane %v367, 1
      %v472 = vrot.slane %v368, 1
      %v473 = vrot.slane %v369, 1
      %v474 = vrot.slane %v370, 1
      %v475 = vrot.slane %v371, 1
      %v476 = vrot.slane %v372, 1
      %v477 = vrot.slane %v373, 1
      %v478 = vrot.slane %v374, 1
      %v479 = vrot.slane %v375, 1
      %480 = vrot.lane.b32.xlu0 %v471, 8
      %v481 = vpop.permute.xlu0 %480
      %482 = vrot.lane.b32.xlu0 %v472, 8
      %v483 = vpop.permute.xlu0 %482
      %484 = vrot.lane.b32.xlu0 %v473, 8
      %v485 = vpop.permute.xlu0 %484
      %486 = vrot.lane.b32.xlu0 %v474, 8
      %v487 = vpop.permute.xlu0 %486
      %488 = vrot.lane.b32.xlu0 %v475, 8
      %v489 = vpop.permute.xlu0 %488
      %490 = vrot.lane.b32.xlu0 %v476, 8
      %v491 = vpop.permute.xlu0 %490
      %492 = vrot.lane.b32.xlu0 %v477, 8
      %v493 = vpop.permute.xlu0 %492
      %494 = vrot.lane.b32.xlu0 %v478, 8
      %v495 = vpop.permute.xlu0 %494
      %496 = vrot.lane.b32.xlu0 %v479, 8
      %v497 = vpop.permute.xlu0 %496
      %vm498 = vcmask 31744
      %v500 = vsel %vm498, %v367, %v445
      %v502 = vsel %vm498, %v368, %v447
      %v504 = vsel %vm498, %v369, %v449
      %v506 = vsel %vm498, %v370, %v451
      %v508 = vsel %vm498, %v371, %v453
      %v510 = vsel %vm498, %v372, %v455
      %v512 = vsel %vm498, %v373, %v457
      %v514 = vsel %vm498, %v374, %v459
      %v516 = vsel %vm498, %v375, %v461
      %vm517 = vcmask 64512
      %v519 = vsel %vm517, %v500, %v481
      %v521 = vsel %vm517, %v502, %v483
      %v523 = vsel %vm517, %v504, %v485
      %v525 = vsel %vm517, %v506, %v487
      %v527 = vsel %vm517, %v508, %v489
      %v529 = vsel %vm517, %v510, %v491
      %v531 = vsel %vm517, %v512, %v493
      %v533 = vsel %vm517, %v514, %v495
      %v535 = vsel %vm517, %v516, %v497
      %544 = vrot.lane.b32.xlu0 %v521, 12
      %v545 = vpop.permute.xlu0 %544
      %546 = vrot.lane.b32.xlu0 %v523, 12
      %v547 = vpop.permute.xlu0 %546
      %548 = vrot.lane.b32.xlu0 %v525, 12
      %v549 = vpop.permute.xlu0 %548
      %550 = vrot.lane.b32.xlu0 %v527, 12
      %v551 = vpop.permute.xlu0 %550
      %552 = vrot.lane.b32.xlu0 %v529, 12
      %v553 = vpop.permute.xlu0 %552
      %554 = vrot.lane.b32.xlu0 %v531, 12
      %v555 = vpop.permute.xlu0 %554
      %556 = vrot.lane.b32.xlu0 %v533, 12
      %v557 = vpop.permute.xlu0 %556
      %558 = vrot.lane.b32.xlu0 %v535, 12
      %v559 = vpop.permute.xlu0 %558
      %561 = vrot.lane.b32.xlu0 %v523, 24
      %v562 = vpop.permute.xlu0 %561
      %563 = vrot.lane.b32.xlu0 %v525, 24
      %v564 = vpop.permute.xlu0 %563
      %565 = vrot.lane.b32.xlu0 %v527, 24
      %v566 = vpop.permute.xlu0 %565
      %567 = vrot.lane.b32.xlu0 %v529, 24
      %v568 = vpop.permute.xlu0 %567
      %569 = vrot.lane.b32.xlu0 %v531, 24
      %v570 = vpop.permute.xlu0 %569
      %571 = vrot.lane.b32.xlu0 %v533, 24
      %v572 = vpop.permute.xlu0 %571
      %573 = vrot.lane.b32.xlu0 %v535, 24
      %v574 = vpop.permute.xlu0 %573
      %575 = vrot.lane.b32.xlu0 %v519, 24
      %v576 = vpop.permute.xlu0 %575
      %vm577 = vcmask 97280
      %v579 = vsel %vm577, %v519, %v545
      %v581 = vsel %vm577, %v521, %v547
      %v583 = vsel %vm577, %v523, %v549
      %v585 = vsel %vm577, %v525, %v551
      %v587 = vsel %vm577, %v527, %v553
      %v589 = vsel %vm577, %v529, %v555
      %v591 = vsel %vm577, %v531, %v557
      %v593 = vsel %vm577, %v533, %v559
      %vm594 = vcmask 195584
      %v596 = vsel %vm594, %v579, %v562
      %v598 = vsel %vm594, %v581, %v564
      %v600 = vsel %vm594, %v583, %v566
      %v602 = vsel %vm594, %v585, %v568
      %v604 = vsel %vm594, %v587, %v570
      %v606 = vsel %vm594, %v589, %v572
      %v608 = vsel %vm594, %v591, %v574
      %v610 = vsel %vm594, %v593, %v576
      %v619 = vunpack.c.l.b16 %v596
      %v620 = vunpack.c.l.b16 %v598
      %v621 = vunpack.c.l.b16 %v600
      %v622 = vunpack.c.l.b16 %v602
      %v623 = vunpack.c.l.b16 %v604
      %v624 = vunpack.c.l.b16 %v606
      %v625 = vunpack.c.l.b16 %v608
      %v626 = vunpack.c.l.b16 %v610
      %v627 = vpack.c.b16 %v620, %v619
      %v628 = vpack.c.b16 %v622, %v621
      %v629 = vpack.c.b16 %v624, %v623
      %v630 = vpack.c.b16 %v626, %v625
      %v636 = vunpack.c.l.b16 %v376
      %v637 = vunpack.c.l.b16 %v377
      %v638 = vunpack.c.l.b16 %v378
      %v639 = vunpack.c.l.b16 %v379
      %v640 = vunpack.c.l.b16 %v380
      %v641 = vpack.c.b16 %v637, %v636
      %v642 = vpack.c.b16 %v639, %v638
      %v643 = vpack.c.b16 %v640, %v640
      %vm646 = vcmask 293888
      %v648 = vsel %vm646, %v627, 0
      %v651 = vsel %vm646, %v628, 0
      %v654 = vsel %vm646, %v629, 0
      %v657 = vsel %vm646, %v630, 0
      %vm659 = vcmask 1041408
      %v661 = vsel %vm659, %v643, 0
      %663 = vmatprep.subr.bf16.mxu0 0
      %664 = vmatpush1.bf16.msra.mxu0 0
      %665 = vmatprep.subr.bf16.mxu0 0
      %666 = vmatpush1.bf16.msra.mxu0 0
      %667 = vmatprep.subr.bf16.mxu0 0
      %668 = vmatpush1.bf16.msra.mxu0 0
      %669 = vmatprep.subr.bf16.mxu0 0
      %670 = vmatpush1.bf16.msra.mxu0 0
      %671 = vmatprep.subr.bf16.mxu0 0
      %672 = vmatpush1.bf16.msra.mxu0 0
      %673 = vmatprep.subr.bf16.mxu0 0
      %674 = vmatpush1.bf16.msra.mxu0 %v661
      %675 = vmatprep.subr.bf16.mxu0 0
      %676 = vmatpush1.bf16.msra.mxu0 %v642
      %677 = vmatprep.subr.bf16.mxu0 0
      %678 = vmatpush1.bf16.msra.mxu0 %v641
      %679 = vmatprep.subr.bf16.mxu0 0
      %680 = vmatpush2.bf16.msra.mxu0 0
      %681 = vmatprep.subr.bf16.mxu0 0
      %682 = vmatpush2.bf16.msra.mxu0 0
      %683 = vmatprep.subr.bf16.mxu0 0
      %684 = vmatpush2.bf16.msra.mxu0 0
      %685 = vmatprep.subr.bf16.mxu0 0
      %686 = vmatpush2.bf16.msra.mxu0 0
      %687 = vmatprep.subr.bf16.mxu0 0
      %688 = vmatpush2.bf16.msra.mxu0 0
      %689 = vmatprep.subr.bf16.mxu0 0
      %690 = vmatpush2.bf16.msra.mxu0 0
      %691 = vmatprep.subr.bf16.mxu0 0
      %692 = vmatpush2.bf16.msra.mxu0 0
      %693 = vmatprep.subr.bf16.mxu0 0
      %694 = vmatpush2.bf16.msra.mxu0 0
      %695 = vmatprep.mubr.bf16.mxu0 0
      %696 = vmatmul.mubr.bf16.gmra.mxu0 %v648
      %v697 = vpop.f32.mrf.mxu0
      %v698 = vadd.f32 0.0, %v697
      %v699 = vpop.f32.mrf.mxu0
      %v700 = vpop.f32.mrf.mxu0
      %v701 = vadd.f32 0.0, %v700
      %v702 = vpop.f32.mrf.mxu0
      %703 = vmatprep.mubr.bf16.mxu0 0
      %704 = vmatmul.mubr.bf16.gmra.mxu0 %v651
      %v705 = vpop.f32.mrf.mxu0
      %v706 = vadd.f32 0.0, %v705
      %v707 = vpop.f32.mrf.mxu0
      %v708 = vpop.f32.mrf.mxu0
      %v709 = vadd.f32 0.0, %v708
      %v710 = vpop.f32.mrf.mxu0
      %711 = vmatprep.mubr.bf16.mxu0 0
      %712 = vmatmul.mubr.bf16.gmra.mxu0 %v654
      %v713 = vpop.f32.mrf.mxu0
      %v714 = vadd.f32 0.0, %v713
      %v715 = vpop.f32.mrf.mxu0
      %v716 = vpop.f32.mrf.mxu0
      %v717 = vadd.f32 0.0, %v716
      %v718 = vpop.f32.mrf.mxu0
      %719 = vmatprep.mubr.bf16.mxu0 0
      %720 = vmatmul.mubr.bf16.gmra.mxu0 %v657
      %v721 = vpop.f32.mrf.mxu0
      %v722 = vadd.f32 0.0, %v721
      %v723 = vpop.f32.mrf.mxu0
      %v724 = vpop.f32.mrf.mxu0
      %v725 = vadd.f32 0.0, %v724
      %v726 = vpop.f32.mrf.mxu0
      %727 = vdwg.mxu0
      %v728 = vsel %vm517, %v698, 0.0
      %v729 = vsel %vm517, %v701, 0.0
      %v730 = vadd.f32 %v728, %v729
      %v731 = vsel %vm517, %v706, 0.0
      %v732 = vadd.f32 %v730, %v731
      %v733 = vsel %vm517, %v709, 0.0
      %v734 = vadd.f32 %v732, %v733
      %v735 = vsel %vm517, %v714, 0.0
      %v736 = vadd.f32 %v734, %v735
      %v737 = vsel %vm517, %v717, 0.0
      %v738 = vadd.f32 %v736, %v737
      %v739 = vsel %vm517, %v722, 0.0
      %v740 = vadd.f32 %v738, %v739
      %v741 = vsel %vm517, %v725, 0.0
      %v742 = vadd.f32 %v740, %v741
      %v743 = vrot.slane %v742, 4
      %v744 = vadd.f32 %v742, %v743
      %v745 = vrot.slane %v744, 2
      %v746 = vadd.f32 %v744, %v745
      %v747 = vrot.slane %v746, 1
      %v748 = vadd.f32 %v746, %v747
      %v749 = vmul.f32 %v748, 0.015625
      %v750 = vsub.f32 %v698, %v749
      %v751 = vsub.f32 %v701, %v749
      %v752 = vsub.f32 %v706, %v749
      %v753 = vsub.f32 %v709, %v749
      %v754 = vsub.f32 %v714, %v749
      %v755 = vsub.f32 %v717, %v749
      %v756 = vsub.f32 %v722, %v749
      %v757 = vsub.f32 %v725, %v749
      %v758 = vmul.f32 %v750, %v750
      %v759 = vmul.f32 %v751, %v751
      %v760 = vmul.f32 %v752, %v752
      %v761 = vmul.f32 %v753, %v753
      %v762 = vmul.f32 %v754, %v754
      %v763 = vmul.f32 %v755, %v755
      %v764 = vmul.f32 %v756, %v756
      %v765 = vmul.f32 %v757, %v757
      %v766 = vsel %vm517, %v758, 0.0
      %v767 = vsel %vm517, %v759, 0.0
      %v768 = vadd.f32 %v766, %v767
      %v769 = vsel %vm517, %v760, 0.0
      %v770 = vadd.f32 %v768, %v769
      %v771 = vsel %vm517, %v761, 0.0
      %v772 = vadd.f32 %v770, %v771
      %v773 = vsel %vm517, %v762, 0.0
      %v774 = vadd.f32 %v772, %v773
      %v775 = vsel %vm517, %v763, 0.0
      %v776 = vadd.f32 %v774, %v775
      %v777 = vsel %vm517, %v764, 0.0
      %v778 = vadd.f32 %v776, %v777
      %v779 = vsel %vm517, %v765, 0.0
      %v780 = vadd.f32 %v778, %v779
      %v781 = vrot.slane %v780, 4
      %v782 = vadd.f32 %v780, %v781
      %v783 = vrot.slane %v782, 2
      %v784 = vadd.f32 %v782, %v783
      %v785 = vrot.slane %v784, 1
      %v786 = vadd.f32 %v784, %v785
      %vm787 = vcmask 57344
      %788 = vst.msk [vmem:[%s211] sm:$0x1] %vm787, %v748
      %789 = vst.msk [vmem:[%s214] sm:$0x1] %vm787, %v786
      %v790 = vpack.c.bf16 %v698, %v698
      %v791 = vpack.c.bf16 %v701, %v701
      %v792 = vpack.c.bf16 %v706, %v706
      %v793 = vpack.c.bf16 %v709, %v709
      %v794 = vpack.c.bf16 %v714, %v714
      %v795 = vpack.c.bf16 %v717, %v717
      %v796 = vpack.c.bf16 %v722, %v722
      %v797 = vpack.c.bf16 %v725, %v725
      %vm798 = vcmask 60416
      %799 = vst.msk [vmem:[%s208] sm:$0xf] %vm798, %v790
      %800 = vst.msk [vmem:[%s208 + $0x4] sm:$0xf] %vm798, %v791
      %801 = vst.msk [vmem:[%s208 + $0x8] sm:$0xf] %vm798, %v792
      %802 = vst.msk [vmem:[%s208 + $0xc] sm:$0xf] %vm798, %v793
      %803 = vst.msk [vmem:[%s208 + $0x10] sm:$0xf] %vm798, %v794
      %804 = vst.msk [vmem:[%s208 + $0x14] sm:$0xf] %vm798, %v795
      %805 = vst.msk [vmem:[%s208 + $0x18] sm:$0xf] %vm798, %v796
      %806 = vst.msk [vmem:[%s208 + $0x1c] sm:$0xf] %vm798, %v797
      %p807 = scmp.lt.s32.totalorder %s16, 1
      %s808 = scalar_select %p807, %s16, 1
      %s809 = smul.addr %s808, 8
      %s810 = smul.addr %s809, 4
      %s811 = scalar_lea.vmem %s2, %s810
      %p812 = scmp.lt.s32.totalorder %s16, 1
      %s813 = scalar_select %p812, %s16, 1
      %s814 = scalar_lea.vmem %s3, %s813
      %p815 = scmp.lt.s32.totalorder %s16, 1
      %s816 = scalar_select %p815, %s16, 1
      %s817 = scalar_lea.vmem %s4, %s816
      // Predicated region
      $region29: #{down_forward.3} parent=27 // pred_check
        %p818 = pneg %p81
      $region30: #{down_forward.3} parent=27 // pred_check_branch
        %820 = sbr.rel (%p818) target = $region32
      $region31: #{down_forward.3} parent=27 // pred_region
        _
      $region32: #{down_forward.3} parent=27 // pred_fallthru
        _
      // Predicated region
      $region33: #{down_forward.3} parent=27 // pred_check
        %p821 = pneg %p107
      $region34: #{down_forward.3} parent=27 // pred_check_branch
        %823 = sbr.rel (%p821) target = $region36
      $region35: #{down_forward.3} parent=27 // pred_region
        _
      $region36: #{down_forward.3} parent=27 // pred_fallthru
        _
      // Predicated region
      $region37: #{down_forward.3} parent=27 // pred_check
        %p824 = pneg %p133
      $region38: #{down_forward.3} parent=27 // pred_check_branch
        %826 = sbr.rel (%p824) target = $region40
      $region39: #{down_forward.3} parent=27 // pred_region
        _
      $region40: #{down_forward.3} parent=27 // pred_fallthru
        _
    $region28: #{down_forward.3} parent=5 // pred_fallthru
      _
    %p827 = scmp.le.s32.totalorder 2, %s11
    // Predicated region
    $region41: #{down_forward.3} parent=5 // pred_check
      %p828 = pneg %p827
    $region42: #{down_forward.3} parent=5 // pred_check_branch
      %830 = sbr.rel (%p828) target = $region44
    $region43: #{down_forward.3} parent=5 // pred_region
      %s831 = ssub.s32 %s11, 2
      // Predicated region
      $region45: #{down_forward.3} parent=43 // pred_check
        %p832 = pneg %p87
      $region46: #{down_forward.3} parent=43 // pred_check_branch
        %834 = sbr.rel (%p832) target = $region48
      $region47: #{down_forward.3} parent=43 // pred_region
        %p835 = scmp.lt.s32.totalorder %s17, 1
        %s836 = scalar_select %p835, %s17, 1
        %s837 = smul.addr %s836, 8
        %s838 = smul.addr %s837, 4
        %s839 = scalar_lea.vmem %s2, %s838
      $region48: #{down_forward.3} parent=43 // pred_fallthru
        _
      // Predicated region
      $region49: #{down_forward.3} parent=43 // pred_check
        %p840 = pneg %p113
      $region50: #{down_forward.3} parent=43 // pred_check_branch
        %842 = sbr.rel (%p840) target = $region52
      $region51: #{down_forward.3} parent=43 // pred_region
        %p843 = scmp.lt.s32.totalorder %s17, 1
        %s844 = scalar_select %p843, %s17, 1
        %s845 = scalar_lea.vmem %s3, %s844
      $region52: #{down_forward.3} parent=43 // pred_fallthru
        _
      // Predicated region
      $region53: #{down_forward.3} parent=43 // pred_check
        %p846 = pneg %p139
      $region54: #{down_forward.3} parent=43 // pred_check_branch
        %848 = sbr.rel (%p846) target = $region56
      $region55: #{down_forward.3} parent=43 // pred_region
        %p849 = scmp.lt.s32.totalorder %s17, 1
        %s850 = scalar_select %p849, %s17, 1
        %s851 = scalar_lea.vmem %s4, %s850
      $region56: #{down_forward.3} parent=43 // pred_fallthru
        _
    $region44: #{down_forward.3} parent=5 // pred_fallthru
      _
  $region6: #{down_forward.3} parent=0 // loop_footer
    %s15 = sadd.s32 1, %s11
  $region7: #{down_forward.3} parent=0 // loop_footer_branch
    %10 = sbr.rel target = $region3
  $region8: #{down_forward.3} parent=0 // loop_exit
    _

// kernel: down_forward.4
$region0: #{down_forward.4}
  #allocation0 [shape = 'u32[]', space=smem, size = 0x4, offset = 0x4, fixed_abs, tag = 'smem constant byte address 0x4 - core index']
  #allocation1 [shape = 'u32[144,128]{1,0:T(1,128)}', space=vmem, size = 0x12000, scoped, tag = 'internal scratch']
  %s0 = inlined_call_operand.vmem [shape: bf16[2,8,8,8], index: 0, kind: input, shape index: {}]
  %s1 = inlined_call_operand.vmem [shape: f32[1,8], index: 1, kind: input, shape index: {}]
  %s2 = inlined_call_operand.vmem [shape: f32[1,8], index: 2, kind: input, shape index: {}]
  %s3 = inlined_call_operand.vmem [shape: bf16[72,8], index: 3, kind: input, shape index: {}]
  %s4 = inlined_call_operand.vmem [shape: bf16[2,64,8], index: 4, kind: output, shape index: {0}]
  %s5 = inlined_call_operand.vmem [shape: f32[2,1,8], index: 5, kind: output, shape index: {1}]
  %s6 = inlined_call_operand.vmem [shape: f32[2,1,8], index: 6, kind: output, shape index: {2}]
  %7 = xla_tuple %s4, %s5, %s6
  %s8 = sld [smem:[#allocation0]]
  $region65: #{down_forward.4} parent=0
    _
  %s10 = ssub.s32 1, %s8
  %s11 = scalar_select 0, %s10, %s8
  loop: start=0, step=1, limit=4
  $region2: #{down_forward.4} parent=0 // loop_pre_header
    _
  $region3: #{down_forward.4} parent=0 // loop_header
    %s13 = sphi 0, %s17
    %p14 = scmp.ge.s32.totalorder %s13, 4
    %s23 = sphi 0, %s25
    %s26 = sphi 0, %s23
    %s27 = sphi 0, %s26
    %s43 = sphi 0, %s27
    %s47 = sphi 0, %s47
    %s49 = sphi 0, %s47
    %s50 = sphi 0, %s49
    %s64 = sphi 0, %s50
    %s68 = sphi 0, %s68
    %s70 = sphi 0, %s68
    %s71 = sphi 0, %s70
    %s85 = sphi 0, %s71
    %s89 = sphi 0, %s89
    %s91 = sphi 0, %s89
    %s92 = sphi 0, %s91
    %s106 = sphi 0, %s92
    %s112 = sphi 0, %s114
    %s115 = sphi 0, %s112
    %s116 = sphi 0, %s115
    %s132 = sphi 0, %s116
    %s138 = sphi 0, %s140
    %s141 = sphi 0, %s138
    %s142 = sphi 0, %s141
    %s158 = sphi 0, %s142
    %s164 = sphi 0, %s166
    %s167 = sphi 0, %s164
    %s168 = sphi 0, %s167
    %s184 = sphi 0, %s168
  $region4: #{down_forward.4} parent=0 // loop_header_branch
    %16 = sbr.rel (%p14) target = $region8
  $region5: #{down_forward.4} parent=0 // loop_body
    %s18 = ssub.s32 %s13, 1
    %s19 = ssub.s32 %s13, 2
    %s20 = sadd.s32 %s13, 1
    %s21 = ssub.s32 %s13, %s20
    %p22 = scmp.eq.s32.totalorder %s21, 0
    %s24 = sadd.s32 %s23, 1
    %s25 = scalar_select %p22, %s23, %s24
    %p28 = pneg %p22
    %p29 = scmp.eq.s32.totalorder %s13, 1
    %p30 = por %p28, %p29
    %p31 = scmp.ne.s32.totalorder %s23, %s26
    %p32 = scmp.eq.s32.totalorder %s13, 0
    %p33 = por %p31, %p32
    %p34 = scmp.ne.s32.totalorder %s23, %s26
    %p35 = scmp.eq.s32.totalorder %s18, 1
    %p36 = por %p34, %p35
    %p37 = scmp.ne.s32.totalorder %s26, %s27
    %p38 = scmp.eq.s32.totalorder %s18, 0
    %p39 = por %p37, %p38
    %p40 = scmp.ne.s32.totalorder %s26, %s27
    %p41 = scmp.eq.s32.totalorder %s19, 1
    %p42 = por %p40, %p41
    %p44 = scmp.ne.s32.totalorder %s27, %s43
    %p45 = scmp.eq.s32.totalorder %s19, 0
    %p46 = por %p44, %p45
    %s48 = sadd.s32 %s47, 1
    %p51 = scmp.eq.s32.totalorder %s13, 1
    %p52 = scmp.ne.s32.totalorder %s47, %s49
    %p53 = scmp.eq.s32.totalorder %s13, 0
    %p54 = por %p52, %p53
    %p55 = scmp.ne.s32.totalorder %s47, %s49
    %p56 = scmp.eq.s32.totalorder %s18, 1
    %p57 = por %p55, %p56
    %p58 = scmp.ne.s32.totalorder %s49, %s50
    %p59 = scmp.eq.s32.totalorder %s18, 0
    %p60 = por %p58, %p59
    %p61 = scmp.ne.s32.totalorder %s49, %s50
    %p62 = scmp.eq.s32.totalorder %s19, 1
    %p63 = por %p61, %p62
    %p65 = scmp.ne.s32.totalorder %s50, %s64
    %p66 = scmp.eq.s32.totalorder %s19, 0
    %p67 = por %p65, %p66
    %s69 = sadd.s32 %s68, 1
    %p72 = scmp.eq.s32.totalorder %s13, 1
    %p73 = scmp.ne.s32.totalorder %s68, %s70
    %p74 = scmp.eq.s32.totalorder %s13, 0
    %p75 = por %p73, %p74
    %p76 = scmp.ne.s32.totalorder %s68, %s70
    %p77 = scmp.eq.s32.totalorder %s18, 1
    %p78 = por %p76, %p77
    %p79 = scmp.ne.s32.totalorder %s70, %s71
    %p80 = scmp.eq.s32.totalorder %s18, 0
    %p81 = por %p79, %p80
    %p82 = scmp.ne.s32.totalorder %s70, %s71
    %p83 = scmp.eq.s32.totalorder %s19, 1
    %p84 = por %p82, %p83
    %p86 = scmp.ne.s32.totalorder %s71, %s85
    %p87 = scmp.eq.s32.totalorder %s19, 0
    %p88 = por %p86, %p87
    %s90 = sadd.s32 %s89, 1
    %p93 = scmp.eq.s32.totalorder %s13, 1
    %p94 = scmp.ne.s32.totalorder %s89, %s91
    %p95 = scmp.eq.s32.totalorder %s13, 0
    %p96 = por %p94, %p95
    %p97 = scmp.ne.s32.totalorder %s89, %s91
    %p98 = scmp.eq.s32.totalorder %s18, 1
    %p99 = por %p97, %p98
    %p100 = scmp.ne.s32.totalorder %s91, %s92
    %p101 = scmp.eq.s32.totalorder %s18, 0
    %p102 = por %p100, %p101
    %p103 = scmp.ne.s32.totalorder %s91, %s92
    %p104 = scmp.eq.s32.totalorder %s19, 1
    %p105 = por %p103, %p104
    %p107 = scmp.ne.s32.totalorder %s92, %s106
    %p108 = scmp.eq.s32.totalorder %s19, 0
    %p109 = por %p107, %p108
    %s110 = ssub.s32 %s13, %s20
    %p111 = scmp.eq.s32.totalorder %s110, 0
    %s113 = sadd.s32 %s112, 1
    %s114 = scalar_select %p111, %s112, %s113
    %p117 = pneg %p111
    %p118 = scmp.eq.s32.totalorder %s13, 1
    %p119 = por %p117, %p118
    %p120 = scmp.ne.s32.totalorder %s112, %s115
    %p121 = scmp.eq.s32.totalorder %s13, 0
    %p122 = por %p120, %p121
    %p123 = scmp.ne.s32.totalorder %s112, %s115
    %p124 = scmp.eq.s32.totalorder %s18, 1
    %p125 = por %p123, %p124
    %p126 = scmp.ne.s32.totalorder %s115, %s116
    %p127 = scmp.eq.s32.totalorder %s18, 0
    %p128 = por %p126, %p127
    %p129 = scmp.ne.s32.totalorder %s115, %s116
    %p130 = scmp.eq.s32.totalorder %s19, 1
    %p131 = por %p129, %p130
    %p133 = scmp.ne.s32.totalorder %s116, %s132
    %p134 = scmp.eq.s32.totalorder %s19, 0
    %p135 = por %p133, %p134
    %s136 = ssub.s32 %s13, %s20
    %p137 = scmp.eq.s32.totalorder %s136, 0
    %s139 = sadd.s32 %s138, 1
    %s140 = scalar_select %p137, %s138, %s139
    %p143 = pneg %p137
    %p144 = scmp.eq.s32.totalorder %s13, 1
    %p145 = por %p143, %p144
    %p146 = scmp.ne.s32.totalorder %s138, %s141
    %p147 = scmp.eq.s32.totalorder %s13, 0
    %p148 = por %p146, %p147
    %p149 = scmp.ne.s32.totalorder %s138, %s141
    %p150 = scmp.eq.s32.totalorder %s18, 1
    %p151 = por %p149, %p150
    %p152 = scmp.ne.s32.totalorder %s141, %s142
    %p153 = scmp.eq.s32.totalorder %s18, 0
    %p154 = por %p152, %p153
    %p155 = scmp.ne.s32.totalorder %s141, %s142
    %p156 = scmp.eq.s32.totalorder %s19, 1
    %p157 = por %p155, %p156
    %p159 = scmp.ne.s32.totalorder %s142, %s158
    %p160 = scmp.eq.s32.totalorder %s19, 0
    %p161 = por %p159, %p160
    %s162 = ssub.s32 %s13, %s20
    %p163 = scmp.eq.s32.totalorder %s162, 0
    %s165 = sadd.s32 %s164, 1
    %s166 = scalar_select %p163, %s164, %s165
    %p169 = pneg %p163
    %p170 = scmp.eq.s32.totalorder %s13, 1
    %p171 = por %p169, %p170
    %p172 = scmp.ne.s32.totalorder %s164, %s167
    %p173 = scmp.eq.s32.totalorder %s13, 0
    %p174 = por %p172, %p173
    %p175 = scmp.ne.s32.totalorder %s164, %s167
    %p176 = scmp.eq.s32.totalorder %s18, 1
    %p177 = por %p175, %p176
    %p178 = scmp.ne.s32.totalorder %s167, %s168
    %p179 = scmp.eq.s32.totalorder %s18, 0
    %p180 = por %p178, %p179
    %p181 = scmp.ne.s32.totalorder %s167, %s168
    %p182 = scmp.eq.s32.totalorder %s19, 1
    %p183 = por %p181, %p182
    %p185 = scmp.ne.s32.totalorder %s168, %s184
    %p186 = scmp.eq.s32.totalorder %s19, 0
    %p187 = por %p185, %p186
    %p188 = scmp.le.s32.totalorder 1, %s13
    %p189 = scmp.lt.s32.totalorder %s13, 3
    %p190 = pnand %p188, %p189
    %p191 = pneg %p190
    // Predicated region
    $region9: #{down_forward.4} parent=5 // pred_check
      _
    $region10: #{down_forward.4} parent=5 // pred_check_branch
      %193 = sbr.rel (%p190) target = $region12
    $region11: #{down_forward.4} parent=5 // pred_region
      %s194 = ssub.s32 %s13, 1
      // Predicated region
      $region13: #{down_forward.4} parent=11 // pred_check
        %p195 = pneg %p60
      $region14: #{down_forward.4} parent=11 // pred_check_branch
        %197 = sbr.rel (%p195) target = $region16
      $region15: #{down_forward.4} parent=11 // pred_region
        _
      $region16: #{down_forward.4} parent=11 // pred_fallthru
        _
      // Predicated region
      $region17: #{down_forward.4} parent=11 // pred_check
        %p198 = pneg %p81
      $region18: #{down_forward.4} parent=11 // pred_check_branch
        %200 = sbr.rel (%p198) target = $region20
      $region19: #{down_forward.4} parent=11 // pred_region
        _
      $region20: #{down_forward.4} parent=11 // pred_fallthru
        _
      // Predicated region
      $region21: #{down_forward.4} parent=11 // pred_check
        %p201 = pneg %p102
      $region22: #{down_forward.4} parent=11 // pred_check_branch
        %203 = sbr.rel (%p201) target = $region24
      $region23: #{down_forward.4} parent=11 // pred_region
        _
      $region24: #{down_forward.4} parent=11 // pred_fallthru
        _
    $region12: #{down_forward.4} parent=5 // pred_fallthru
      _
    %p204 = scmp.lt.s32.totalorder %s13, 2
    // Predicated region
    $region25: #{down_forward.4} parent=5 // pred_check
      %p205 = pneg %p204
    $region26: #{down_forward.4} parent=5 // pred_check_branch
      %207 = sbr.rel (%p205) target = $region28
    $region27: #{down_forward.4} parent=5 // pred_region
      // Predicated region
      $region29: #{down_forward.4} parent=27 // pred_check
        %p208 = pneg %p33
      $region30: #{down_forward.4} parent=27 // pred_check_branch
        %210 = sbr.rel (%p208) target = $region32
      $region31: #{down_forward.4} parent=27 // pred_region
        %p211 = scmp.lt.s32.totalorder %s13, 1
        %s212 = scalar_select %p211, %s13, 1
        %s213 = smul.addr %s212, 8
        %s214 = smul.addr %s213, 4
        %s215 = scalar_lea.vmem %s0, %s214
      $region32: #{down_forward.4} parent=27 // pred_fallthru
        _
    $region28: #{down_forward.4} parent=5 // pred_fallthru
      _
    %p216 = scmp.le.s32.totalorder 1, %s13
    %p217 = scmp.lt.s32.totalorder %s13, 3
    %p218 = pnand %p216, %p217
    %p219 = pneg %p218
    // Predicated region
    $region33: #{down_forward.4} parent=5 // pred_check
      _
    $region34: #{down_forward.4} parent=5 // pred_check_branch
      %221 = sbr.rel (%p218) target = $region36
    $region35: #{down_forward.4} parent=5 // pred_region
      %s222 = ssub.s32 %s13, 1
      %p223 = scmp.lt.s32.totalorder %s18, 1
      %s224 = scalar_select %p223, %s18, 1
      %s225 = smul.addr %s224, 8
      %s226 = smul.addr %s225, 4
      %s227 = scalar_lea.vmem %s0, %s226
      %p228 = pneg %p39
      %p229 = pneg %p36
      %p230 = pneg %p60
      %p231 = pneg %p57
      %p232 = pneg %p81
      %p233 = pneg %p78
      %p234 = pneg %p102
      %p235 = pneg %p99
      %p236 = pneg %p128
      %p237 = pneg %p125
      %p238 = scmp.lt.s32.totalorder %s18, 1
      %s239 = scalar_select %p238, %s18, 1
      %s240 = smul.addr %s239, 8
      %s241 = smul.addr %s240, 4
      %s242 = scalar_lea.vmem %s4, %s241
      %p243 = pneg %p154
      %p244 = pneg %p151
      %p245 = scmp.lt.s32.totalorder %s18, 1
      %s246 = scalar_select %p245, %s18, 1
      %s247 = scalar_lea.vmem %s5, %s246
      %p248 = pneg %p180
      %p249 = pneg %p177
      %p250 = scmp.lt.s32.totalorder %s18, 1
      %s251 = scalar_select %p250, %s18, 1
      %s252 = scalar_lea.vmem %s6, %s251
      %p253 = scmp.lt.s32.totalorder %s18, 1
      %s254 = scalar_select %p253, %s18, 1
      %s255 = smul.addr %s254, 8
      %s256 = smul.addr %s255, 4
      %s257 = scalar_lea.vmem %s0, %s256
      %p258 = scmp.lt.s32.totalorder %s18, 1
      %s259 = scalar_select %p258, %s18, 1
      %s260 = smul.addr %s259, 8
      %s261 = smul.addr %s260, 4
      %s262 = scalar_lea.vmem %s4, %s261
      %p263 = scmp.lt.s32.totalorder %s18, 1
      %s264 = scalar_select %p263, %s18, 1
      %s265 = scalar_lea.vmem %s5, %s264
      %p266 = scmp.lt.s32.totalorder %s18, 1
      %s267 = scalar_select %p266, %s18, 1
      %s268 = scalar_lea.vmem %s6, %s267
      %v270 = vld [vmem:[%s257] sm:$0xf]
      %v271 = vld [vmem:[%s257 + $0x4] sm:$0xf]
      %v272 = vld [vmem:[%s257 + $0x8] sm:$0xf]
      %v273 = vld [vmem:[%s257 + $0xc] sm:$0xf]
      %v274 = vld [vmem:[%s257 + $0x10] sm:$0xf]
      %v275 = vld [vmem:[%s257 + $0x14] sm:$0xf]
      %v276 = vld [vmem:[%s257 + $0x18] sm:$0xf]
      %v277 = vld [vmem:[%s257 + $0x1c] sm:$0xf]
      %v278 = vunpack.c.l.bf16 %v270
      %v279 = vunpack.c.l.bf16 %v271
      %v280 = vunpack.c.l.bf16 %v272
      %v281 = vunpack.c.l.bf16 %v273
      %v282 = vunpack.c.l.bf16 %v274
      %v283 = vunpack.c.l.bf16 %v275
      %v284 = vunpack.c.l.bf16 %v276
      %v285 = vunpack.c.l.bf16 %v277
      %v286 = vld [vmem:[%s1] sm:$0x1]
      %v288 = vlaneseq
      %v289 = vshrl.u32 %v288, 7
      %v290 = vsub.s32 0, %v289
      %v291 = vrot.slane %v286, %v290
      %v293 = vmul.f32 %v278, %v291
      %v294 = vmul.f32 %v279, %v291
      %v295 = vmul.f32 %v280, %v291
      %v296 = vmul.f32 %v281, %v291
      %v297 = vmul.f32 %v282, %v291
      %v298 = vmul.f32 %v283, %v291
      %v299 = vmul.f32 %v284, %v291
      %v300 = vmul.f32 %v285, %v291
      %v301 = vld [vmem:[%s2] sm:$0x1]
      %v303 = vlaneseq
      %v304 = vshrl.u32 %v303, 7
      %v305 = vsub.s32 0, %v304
      %v306 = vrot.slane %v301, %v305
      %v308 = vadd.f32 %v293, %v306
      %v309 = vadd.f32 %v294, %v306
      %v310 = vadd.f32 %v295, %v306
      %v311 = vadd.f32 %v296, %v306
      %v312 = vadd.f32 %v297, %v306
      %v313 = vadd.f32 %v298, %v306
      %v314 = vadd.f32 %v299, %v306
      %v315 = vadd.f32 %v300, %v306
      %v316 = vmax.f32 %v308, 0.0
      %v317 = vmax.f32 %v309, 0.0
      %v318 = vmax.f32 %v310, 0.0
      %v319 = vmax.f32 %v311, 0.0
      %v320 = vmax.f32 %v312, 0.0
      %v321 = vmax.f32 %v313, 0.0
      %v322 = vmax.f32 %v314, 0.0
      %v323 = vmax.f32 %v315, 0.0
      %v324 = vpack.c.bf16 %v316, %v316
      %v325 = vpack.c.bf16 %v317, %v317
      %v326 = vpack.c.bf16 %v318, %v318
      %v327 = vpack.c.bf16 %v319, %v319
      %v328 = vpack.c.bf16 %v320, %v320
      %v329 = vpack.c.bf16 %v321, %v321
      %v330 = vpack.c.bf16 %v322, %v322
      %v331 = vpack.c.bf16 %v323, %v323
      %v333 = vshrl.u32 0, 16
      %v335 = vrot.slane %v333, 7
      %v336 = vshll.u32 0, 16
      %v338 = vor.u32 %v335, %v336
      %v340 = vshrl.u32 %v324, 16
      %v342 = vrot.slane %v340, 7
      %v343 = vshll.u32 %v324, 16
      %v345 = vor.u32 %v342, %v343
      %v347 = vshrl.u32 %v325, 16
      %v349 = vrot.slane %v347, 7
      %v350 = vshll.u32 %v325, 16
      %v352 = vor.u32 %v349, %v350
      %v354 = vshrl.u32 %v326, 16
      %v356 = vrot.slane %v354, 7
      %v357 = vshll.u32 %v326, 16
      %v359 = vor.u32 %v356, %v357
      %v361 = vshrl.u32 %v327, 16
      %v363 = vrot.slane %v361, 7
      %v364 = vshll.u32 %v327, 16
      %v366 = vor.u32 %v363, %v364
      %v368 = vshrl.u32 %v328, 16
      %v370 = vrot.slane %v368, 7
      %v371 = vshll.u32 %v328, 16
      %v373 = vor.u32 %v370, %v371
      %v375 = vshrl.u32 %v329, 16
      %v377 = vrot.slane %v375, 7
      %v378 = vshll.u32 %v329, 16
      %v380 = vor.u32 %v377, %v378
      %v382 = vshrl.u32 %v330, 16
      %v384 = vrot.slane %v382, 7
      %v385 = vshll.u32 %v330, 16
      %v387 = vor.u32 %v384, %v385
      %v389 = vshrl.u32 %v331, 16
      %v391 = vrot.slane %v389, 7
      %v392 = vshll.u32 %v331, 16
      %v394 = vor.u32 %v391, %v392
      %vm404 = vcmask 1040384
      %vm405 = vsmask.f32 256
      %vm406 = vmand %vm404, %vm405
      %v407 = vsel %vm406, 0, %v338
      %v408 = vsel %vm406, 0, %v345
      %v409 = vsel %vm406, 0, %v352
      %v410 = vsel %vm406, 0, %v359
      %v411 = vsel %vm406, 0, %v366
      %v412 = vsel %vm406, 0, %v373
      %v413 = vsel %vm406, 0, %v380
      %v414 = vsel %vm406, 0, %v387
      %v415 = vsel %vm406, 0, %v394
      %vm416 = vcmask 1044480
      %vm417 = vsmask.f32 4352
      %vm418 = vmand %vm416, %vm417
      %v419 = vsel %vm418, %v407, 0
      %v420 = vsel %vm418, %v408, 0
      %v421 = vsel %vm418, %v409, 0
      %v422 = vsel %vm418, %v410, 0
      %v423 = vsel %vm418, %v411, 0
      %v424 = vsel %vm418, %v412, 0
      %v425 = vsel %vm418, %v413, 0
      %v426 = vsel %vm418, %v414, 0
      %v427 = vsel %vm418, %v415, 0
      %v428 = vld [vmem:[%s3] sm:$0xf]
      %v429 = vld [vmem:[%s3 + $0x4] sm:$0xf]
      %v430 = vld [vmem:[%s3 + $0x8] sm:$0xf]
      %v431 = vld [vmem:[%s3 + $0xc] sm:$0xf]
      %v432 = vld [vmem:[%s3 + $0x10] sm:$0xf]
      %v433 = vld [vmem:[%s3 + $0x14] sm:$0xf]
      %v434 = vld [vmem:[%s3 + $0x18] sm:$0xf]
      %v435 = vld [vmem:[%s3 + $0x1c] sm:$0xf]
      %v436 = vld [vmem:[%s3 + $0x20] sm:$0xf]
      %v438 = vshrl.u32 %v419, 16
      %v440 = vshll.u32 %v419, 16
      %v442 = vrot.slane %v440, 1
      %v443 = vor.u32 %v438, %v442
      %v445 = vshrl.u32 %v420, 16
      %v447 = vshll.u32 %v420, 16
      %v449 = vrot.slane %v447, 1
      %v450 = vor.u32 %v445, %v449
      %v452 = vshrl.u32 %v421, 16
      %v454 = vshll.u32 %v421, 16
      %v456 = vrot.slane %v454, 1
      %v457 = vor.u32 %v452, %v456
      %v459 = vshrl.u32 %v422, 16
      %v461 = vshll.u32 %v422, 16
      %v463 = vrot.slane %v461, 1
      %v464 = vor.u32 %v459, %v463
      %v466 = vshrl.u32 %v423, 16
      %v468 = vshll.u32 %v423, 16
      %v470 = vrot.slane %v468, 1
      %v471 = vor.u32 %v466, %v470
      %v473 = vshrl.u32 %v424, 16
      %v475 = vshll.u32 %v424, 16
      %v477 = vrot.slane %v475, 1
      %v478 = vor.u32 %v473, %v477
      %v480 = vshrl.u32 %v425, 16
      %v482 = vshll.u32 %v425, 16
      %v484 = vrot.slane %v482, 1
      %v485 = vor.u32 %v480, %v484
      %v487 = vshrl.u32 %v426, 16
      %v489 = vshll.u32 %v426, 16
      %v491 = vrot.slane %v489, 1
      %v492 = vor.u32 %v487, %v491
      %v494 = vshrl.u32 %v427, 16
      %v496 = vshll.u32 %v427, 16
      %v498 = vrot.slane %v496, 1
      %v499 = vor.u32 %v494, %v498
      %500 = vrot.lane.b32.xlu0 %v443, 8
      %v501 = vpop.permute.xlu0 %500
      %502 = vrot.lane.b32.xlu0 %v450, 8
      %v503 = vpop.permute.xlu0 %502
      %504 = vrot.lane.b32.xlu0 %v457, 8
      %v505 = vpop.permute.xlu0 %504
      %506 = vrot.lane.b32.xlu0 %v464, 8
      %v507 = vpop.permute.xlu0 %506
      %508 = vrot.lane.b32.xlu0 %v471, 8
      %v509 = vpop.permute.xlu0 %508
      %510 = vrot.lane.b32.xlu0 %v478, 8
      %v511 = vpop.permute.xlu0 %510
      %512 = vrot.lane.b32.xlu0 %v485, 8
      %v513 = vpop.permute.xlu0 %512
      %514 = vrot.lane.b32.xlu0 %v492, 8
      %v515 = vpop.permute.xlu0 %514
      %516 = vrot.lane.b32.xlu0 %v499, 8
      %v517 = vpop.permute.xlu0 %516
      %v527 = vrot.slane %v419, 1
      %v528 = vrot.slane %v420, 1
      %v529 = vrot.slane %v421, 1
      %v530 = vrot.slane %v422, 1
      %v531 = vrot.slane %v423, 1
      %v532 = vrot.slane %v424, 1
      %v533 = vrot.slane %v425, 1
      %v534 = vrot.slane %v426, 1
      %v535 = vrot.slane %v427, 1
      %536 = vrot.lane.b32.xlu0 %v527, 16
      %v537 = vpop.permute.xlu0 %536
      %538 = vrot.lane.b32.xlu0 %v528, 16
      %v539 = vpop.permute.xlu0 %538
      %540 = vrot.lane.b32.xlu0 %v529, 16
      %v541 = vpop.permute.xlu0 %540
      %542 = vrot.lane.b32.xlu0 %v530, 16
      %v543 = vpop.permute.xlu0 %542
      %544 = vrot.lane.b32.xlu0 %v531, 16
      %v545 = vpop.permute.xlu0 %544
      %546 = vrot.lane.b32.xlu0 %v532, 16
      %v547 = vpop.permute.xlu0 %546
      %548 = vrot.lane.b32.xlu0 %v533, 16
      %v549 = vpop.permute.xlu0 %548
      %550 = vrot.lane.b32.xlu0 %v534, 16
      %v551 = vpop.permute.xlu0 %550
      %552 = vrot.lane.b32.xlu0 %v535, 16
      %v553 = vpop.permute.xlu0 %552
      %vm554 = vcmask 64512
      %v556 = vsel %vm554, %v419, %v501
      %v558 = vsel %vm554, %v420, %v503
      %v560 = vsel %vm554, %v421, %v505
      %v562 = vsel %vm554, %v422, %v507
      %v564 = vsel %vm554, %v423, %v509
      %v566 = vsel %vm554, %v424, %v511
      %v568 = vsel %vm554, %v425, %v513
      %v570 = vsel %vm554, %v426, %v515
      %v572 = vsel %vm554, %v427, %v517
      %vm573 = vcmask 130048
      %v575 = vsel %vm573, %v556, %v537
      %v577 = vsel %vm573, %v558, %v539
      %v579 = vsel %vm573, %v560, %v541
      %v581 = vsel %vm573, %v562, %v543
      %v583 = vsel %vm573, %v564, %v545
      %v585 = vsel %vm573, %v566, %v547
      %v587 = vsel %vm573, %v568, %v549
      %v589 = vsel %vm573, %v570, %v551
      %v591 = vsel %vm573, %v572, %v553
      %600 = vrot.lane.b32.xlu0 %v577, 24
      %v601 = vpop.permute.xlu0 %600
      %602 = vrot.lane.b32.xlu0 %v579, 24
      %v603 = vpop.permute.xlu0 %602
      %604 = vrot.lane.b32.xlu0 %v581, 24
      %v605 = vpop.permute.xlu0 %604
      %606 = vrot.lane.b32.xlu0 %v583, 24
      %v607 = vpop.permute.xlu0 %606
      %608 = vrot.lane.b32.xlu0 %v585, 24
      %v609 = vpop.permute.xlu0 %608
      %610 = vrot.lane.b32.xlu0 %v587, 24
      %v611 = vpop.permute.xlu0 %610
      %612 = vrot.lane.b32.xlu0 %v589, 24
      %v613 = vpop.permute.xlu0 %612
      %614 = vrot.lane.b32.xlu0 %v591, 24
      %v615 = vpop.permute.xlu0 %614
      %617 = vrot.lane.b32.xlu0 %v579, 48
      %v618 = vpop.permute.xlu0 %617
      %619 = vrot.lane.b32.xlu0 %v581, 48
      %v620 = vpop.permute.xlu0 %619
      %621 = vrot.lane.b32.xlu0 %v583, 48
      %v622 = vpop.permute.xlu0 %621
      %623 = vrot.lane.b32.xlu0 %v585, 48
      %v624 = vpop.permute.xlu0 %623
      %625 = vrot.lane.b32.xlu0 %v587, 48
      %v626 = vpop.permute.xlu0 %625
      %627 = vrot.lane.b32.xlu0 %v589, 48
      %v628 = vpop.permute.xlu0 %627
      %629 = vrot.lane.b32.xlu0 %v591, 48
      %v630 = vpop.permute.xlu0 %629
      %631 = vrot.lane.b32.xlu0 %v575, 48
      %v632 = vpop.permute.xlu0 %631
      %vm633 = vcmask 195584
      %v635 = vsel %vm633, %v575, %v601
      %v637 = vsel %vm633, %v577, %v603
      %v639 = vsel %vm633, %v579, %v605
      %v641 = vsel %vm633, %v581, %v607
      %v643 = vsel %vm633, %v583, %v609
      %v645 = vsel %vm633, %v585, %v611
      %v647 = vsel %vm633, %v587, %v613
      %v649 = vsel %vm633, %v589, %v615
      %vm650 = vcmask 392192
      %v652 = vsel %vm650, %v635, %v618
      %v654 = vsel %vm650, %v637, %v620
      %v656 = vsel %vm650, %v639, %v622
      %v658 = vsel %vm650, %v641, %v624
      %v660 = vsel %vm650, %v643, %v626
      %v662 = vsel %vm650, %v645, %v628
      %v664 = vsel %vm650, %v647, %v630
      %v666 = vsel %vm650, %v649, %v632
      %v675 = vunpack.c.l.b16 %v652
      %v676 = vunpack.c.l.b16 %v654
      %v677 = vunpack.c.l.b16 %v656
      %v678 = vunpack.c.l.b16 %v658
      %v679 = vunpack.c.l.b16 %v660
      %v680 = vunpack.c.l.b16 %v662
      %v681 = vunpack.c.l.b16 %v664
      %v682 = vunpack.c.l.b16 %v666
      %v683 = vpack.c.b16 %v676, %v675
      %v684 = vpack.c.b16 %v678, %v677
      %v685 = vpack.c.b16 %v680, %v679
      %v686 = vpack.c.b16 %v682, %v681
      %v696 = vunpack.c.l.b16 %v428
      %v697 = vunpack.c.l.b16 %v429
      %v698 = vunpack.c.l.b16 %v430
      %v699 = vunpack.c.l.b16 %v431
      %v700 = vunpack.c.l.b16 %v432
      %v701 = vunpack.c.l.b16 %v433
      %v702 = vunpack.c.l.b16 %v434
      %v703 = vunpack.c.l.b16 %v435
      %v704 = vunpack.c.l.b16 %v436
      %v705 = vpack.c.b16 %v697, %v696
      %v706 = vpack.c.b16 %v699, %v698
      %v707 = vpack.c.b16 %v701, %v700
      %v708 = vpack.c.b16 %v703, %v702
      %v709 = vpack.c.b16 %v704, %v704
      %vm714 = vcmask 588800
      %v716 = vsel %vm714, %v683, 0
      %v719 = vsel %vm714, %v684, 0
      %v722 = vsel %vm714, %v685, 0
      %v725 = vsel %vm714, %v686, 0
      %vm727 = vcmask 1043456
      %v729 = vsel %vm727, %v709, 0
      %731 = vmatprep.subr.bf16.mxu0 0
      %732 = vmatpush1.bf16.msra.mxu0 0
      %733 = vmatprep.subr.bf16.mxu0 0
      %734 = vmatpush1.bf16.msra.mxu0 0
      %735 = vmatprep.subr.bf16.mxu0 0
      %736 = vmatpush1.bf16.msra.mxu0 0
      %737 = vmatprep.subr.bf16.mxu0 0
      %738 = vmatpush1.bf16.msra.mxu0 %v729
      %739 = vmatprep.subr.bf16.mxu0 0
      %740 = vmatpush1.bf16.msra.mxu0 %v708
      %741 = vmatprep.subr.bf16.mxu0 0
      %742 = vmatpush1.bf16.msra.mxu0 %v707
      %743 = vmatprep.subr.bf16.mxu0 0
      %744 = vmatpush1.bf16.msra.mxu0 %v706
      %745 = vmatprep.subr.bf16.mxu0 0
      %746 = vmatpush1.bf16.msra.mxu0 %v705
      %747 = vmatprep.subr.bf16.mxu0 0
      %748 = vmatpush2.bf16.msra.mxu0 0
      %749 = vmatprep.subr.bf16.mxu0 0
      %750 = vmatpush2.bf16.msra.mxu0 0
      %751 = vmatprep.subr.bf16.mxu0 0
      %752 = vmatpush2.bf16.msra.mxu0 0
      %753 = vmatprep.subr.bf16.mxu0 0
      %754 = vmatpush2.bf16.msra.mxu0 0
      %755 = vmatprep.subr.bf16.mxu0 0
      %756 = vmatpush2.bf16.msra.mxu0 0
      %757 = vmatprep.subr.bf16.mxu0 0
      %758 = vmatpush2.bf16.msra.mxu0 0
      %759 = vmatprep.subr.bf16.mxu0 0
      %760 = vmatpush2.bf16.msra.mxu0 0
      %761 = vmatprep.subr.bf16.mxu0 0
      %762 = vmatpush2.bf16.msra.mxu0 0
      %763 = vmatprep.mubr.bf16.mxu0 0
      %764 = vmatmul.mubr.bf16.gmra.mxu0 %v716
      %v765 = vpop.f32.mrf.mxu0
      %v766 = vadd.f32 0.0, %v765
      %v767 = vpop.f32.mrf.mxu0
      %v768 = vpop.f32.mrf.mxu0
      %v769 = vadd.f32 0.0, %v768
      %v770 = vpop.f32.mrf.mxu0
      %771 = vmatprep.mubr.bf16.mxu0 0
      %772 = vmatmul.mubr.bf16.gmra.mxu0 %v719
      %v773 = vpop.f32.mrf.mxu0
      %v774 = vadd.f32 0.0, %v773
      %v775 = vpop.f32.mrf.mxu0
      %v776 = vpop.f32.mrf.mxu0
      %v777 = vadd.f32 0.0, %v776
      %v778 = vpop.f32.mrf.mxu0
      %779 = vmatprep.mubr.bf16.mxu0 0
      %780 = vmatmul.mubr.bf16.gmra.mxu0 %v722
      %v781 = vpop.f32.mrf.mxu0
      %v782 = vadd.f32 0.0, %v781
      %v783 = vpop.f32.mrf.mxu0
      %v784 = vpop.f32.mrf.mxu0
      %v785 = vadd.f32 0.0, %v784
      %v786 = vpop.f32.mrf.mxu0
      %787 = vmatprep.mubr.bf16.mxu0 0
      %788 = vmatmul.mubr.bf16.gmra.mxu0 %v725
      %v789 = vpop.f32.mrf.mxu0
      %v790 = vadd.f32 0.0, %v789
      %v791 = vpop.f32.mrf.mxu0
      %v792 = vpop.f32.mrf.mxu0
      %v793 = vadd.f32 0.0, %v792
      %v794 = vpop.f32.mrf.mxu0
      %795 = vdwg.mxu0
      %v796 = vsel %vm554, %v766, 0.0
      %v797 = vsel %vm554, %v769, 0.0
      %v798 = vadd.f32 %v796, %v797
      %v799 = vsel %vm554, %v774, 0.0
      %v800 = vadd.f32 %v798, %v799
      %v801 = vsel %vm554, %v777, 0.0
      %v802 = vadd.f32 %v800, %v801
      %v803 = vsel %vm554, %v782, 0.0
      %v804 = vadd.f32 %v802, %v803
      %v805 = vsel %vm554, %v785, 0.0
      %v806 = vadd.f32 %v804, %v805
      %v807 = vsel %vm554, %v790, 0.0
      %v808 = vadd.f32 %v806, %v807
      %v809 = vsel %vm554, %v793, 0.0
      %v810 = vadd.f32 %v808, %v809
      %v811 = vrot.slane %v810, 4
      %v812 = vadd.f32 %v810, %v811
      %v813 = vrot.slane %v812, 2
      %v814 = vadd.f32 %v812, %v813
      %v815 = vrot.slane %v814, 1
      %v816 = vadd.f32 %v814, %v815
      %v817 = vmul.f32 %v816, 0.015625
      %v818 = vsub.f32 %v766, %v817
      %v819 = vsub.f32 %v769, %v817
      %v820 = vsub.f32 %v774, %v817
      %v821 = vsub.f32 %v777, %v817
      %v822 = vsub.f32 %v782, %v817
      %v823 = vsub.f32 %v785, %v817
      %v824 = vsub.f32 %v790, %v817
      %v825 = vsub.f32 %v793, %v817
      %v826 = vmul.f32 %v818, %v818
      %v827 = vmul.f32 %v819, %v819
      %v828 = vmul.f32 %v820, %v820
      %v829 = vmul.f32 %v821, %v821
      %v830 = vmul.f32 %v822, %v822
      %v831 = vmul.f32 %v823, %v823
      %v832 = vmul.f32 %v824, %v824
      %v833 = vmul.f32 %v825, %v825
      %v834 = vsel %vm554, %v826, 0.0
      %v835 = vsel %vm554, %v827, 0.0
      %v836 = vadd.f32 %v834, %v835
      %v837 = vsel %vm554, %v828, 0.0
      %v838 = vadd.f32 %v836, %v837
      %v839 = vsel %vm554, %v829, 0.0
      %v840 = vadd.f32 %v838, %v839
      %v841 = vsel %vm554, %v830, 0.0
      %v842 = vadd.f32 %v840, %v841
      %v843 = vsel %vm554, %v831, 0.0
      %v844 = vadd.f32 %v842, %v843
      %v845 = vsel %vm554, %v832, 0.0
      %v846 = vadd.f32 %v844, %v845
      %v847 = vsel %vm554, %v833, 0.0
      %v848 = vadd.f32 %v846, %v847
      %v849 = vrot.slane %v848, 4
      %v850 = vadd.f32 %v848, %v849
      %v851 = vrot.slane %v850, 2
      %v852 = vadd.f32 %v850, %v851
      %v853 = vrot.slane %v852, 1
      %v854 = vadd.f32 %v852, %v853
      %vm855 = vcmask 57344
      %856 = vst.msk [vmem:[%s265] sm:$0x1] %vm855, %v816
      %857 = vst.msk [vmem:[%s268] sm:$0x1] %vm855, %v854
      %v858 = vpack.c.bf16 %v769, %v766
      %v859 = vpack.c.bf16 %v777, %v774
      %v860 = vpack.c.bf16 %v785, %v782
      %v861 = vpack.c.bf16 %v793, %v790
      %v866 = vunpack.c.l.b16 %v858
      %v867 = vunpack.c.h.b16 %v858
      %v868 = vunpack.c.l.b16 %v859
      %v869 = vunpack.c.h.b16 %v859
      %v870 = vunpack.c.l.b16 %v860
      %v871 = vunpack.c.h.b16 %v860
      %v872 = vunpack.c.l.b16 %v861
      %v873 = vunpack.c.h.b16 %v861
      %v874 = vpack.c.b16 %v866, %v866
      %v875 = vpack.c.b16 %v867, %v867
      %v876 = vpack.c.b16 %v868, %v868
      %v877 = vpack.c.b16 %v869, %v869
      %v878 = vpack.c.b16 %v870, %v870
      %v879 = vpack.c.b16 %v871, %v871
      %v880 = vpack.c.b16 %v872, %v872
      %v881 = vpack.c.b16 %v873, %v873
      %vm890 = vcmask 60416
      %891 = vst.msk [vmem:[%s262] sm:$0xf] %vm890, %v874
      %892 = vst.msk [vmem:[%s262 + $0x4] sm:$0xf] %vm890, %v875
      %893 = vst.msk [vmem:[%s262 + $0x8] sm:$0xf] %vm890, %v876
      %894 = vst.msk [vmem:[%s262 + $0xc] sm:$0xf] %vm890, %v877
      %895 = vst.msk [vmem:[%s262 + $0x10] sm:$0xf] %vm890, %v878
      %896 = vst.msk [vmem:[%s262 + $0x14] sm:$0xf] %vm890, %v879
      %897 = vst.msk [vmem:[%s262 + $0x18] sm:$0xf] %vm890, %v880
      %898 = vst.msk [vmem:[%s262 + $0x1c] sm:$0xf] %vm890, %v881
      %p899 = scmp.lt.s32.totalorder %s18, 1
      %s900 = scalar_select %p899, %s18, 1
      %s901 = smul.addr %s900, 8
      %s902 = smul.addr %s901, 4
      %s903 = scalar_lea.vmem %s4, %s902
      %p904 = scmp.lt.s32.totalorder %s18, 1
      %s905 = scalar_select %p904, %s18, 1
      %s906 = scalar_lea.vmem %s5, %s905
      %p907 = scmp.lt.s32.totalorder %s18, 1
      %s908 = scalar_select %p907, %s18, 1
      %s909 = scalar_lea.vmem %s6, %s908
      // Predicated region
      $region37: #{down_forward.4} parent=35 // pred_check
        %p910 = pneg %p125
      $region38: #{down_forward.4} parent=35 // pred_check_branch
        %912 = sbr.rel (%p910) target = $region40
      $region39: #{down_forward.4} parent=35 // pred_region
        _
      $region40: #{down_forward.4} parent=35 // pred_fallthru
        _
      // Predicated region
      $region41: #{down_forward.4} parent=35 // pred_check
        %p913 = pneg %p151
      $region42: #{down_forward.4} parent=35 // pred_check_branch
        %915 = sbr.rel (%p913) target = $region44
      $region43: #{down_forward.4} parent=35 // pred_region
        _
      $region44: #{down_forward.4} parent=35 // pred_fallthru
        _
      // Predicated region
      $region45: #{down_forward.4} parent=35 // pred_check
        %p916 = pneg %p177
      $region46: #{down_forward.4} parent=35 // pred_check_branch
        %918 = sbr.rel (%p916) target = $region48
      $region47: #{down_forward.4} parent=35 // pred_region
        _
      $region48: #{down_forward.4} parent=35 // pred_fallthru
        _
    $region36: #{down_forward.4} parent=5 // pred_fallthru
      _
    %p919 = scmp.le.s32.totalorder 2, %s13
    // Predicated region
    $region49: #{down_forward.4} parent=5 // pred_check
      %p920 = pneg %p919
    $region50: #{down_forward.4} parent=5 // pred_check_branch
      %922 = sbr.rel (%p920) target = $region52
    $region51: #{down_forward.4} parent=5 // pred_region
      %s923 = ssub.s32 %s13, 2
      // Predicated region
      $region53: #{down_forward.4} parent=51 // pred_check
        %p924 = pneg %p131
      $region54: #{down_forward.4} parent=51 // pred_check_branch
        %926 = sbr.rel (%p924) target = $region56
      $region55: #{down_forward.4} parent=51 // pred_region
        %p927 = scmp.lt.s32.totalorder %s19, 1
        %s928 = scalar_select %p927, %s19, 1
        %s929 = smul.addr %s928, 8
        %s930 = smul.addr %s929, 4
        %s931 = scalar_lea.vmem %s4, %s930
      $region56: #{down_forward.4} parent=51 // pred_fallthru
        _
      // Predicated region
      $region57: #{down_forward.4} parent=51 // pred_check
        %p932 = pneg %p157
      $region58: #{down_forward.4} parent=51 // pred_check_branch
        %934 = sbr.rel (%p932) target = $region60
      $region59: #{down_forward.4} parent=51 // pred_region
        %p935 = scmp.lt.s32.totalorder %s19, 1
        %s936 = scalar_select %p935, %s19, 1
        %s937 = scalar_lea.vmem %s5, %s936
      $region60: #{down_forward.4} parent=51 // pred_fallthru
        _
      // Predicated region
      $region61: #{down_forward.4} parent=51 // pred_check
        %p938 = pneg %p183
      $region62: #{down_forward.4} parent=51 // pred_check_branch
        %940 = sbr.rel (%p938) target = $region64
      $region63: #{down_forward.4} parent=51 // pred_region
        %p941 = scmp.lt.s32.totalorder %s19, 1
        %s942 = scalar_select %p941, %s19, 1
        %s943 = scalar_lea.vmem %s6, %s942
      $region64: #{down_forward.4} parent=51 // pred_fallthru
        _
    $region52: #{down_forward.4} parent=5 // pred_fallthru
      _
  $region6: #{down_forward.4} parent=0 // loop_footer
    %s17 = sadd.s32 1, %s13
  $region7: #{down_forward.4} parent=0 // loop_footer_branch
    %12 = sbr.rel target = $region3
  $region8: #{down_forward.4} parent=0 // loop_exit
    _

</llo_original>
